<compile_context>
chip_gen: v5e
topology: v5e:2x2
jax: 0.10.0
libtpu: 0.0.40
codegen_flags: <defaults>
</compile_context>

<pallas_src>
import jax
import jax.numpy as jnp
import numpy as np
from jax.experimental import pallas as pl
from jax.experimental.pallas import tpu as pltpu

ALL_DIRECTIONS = ['N', 'NW', 'W', 'SW', 'S', 'SE', 'E', 'NE', 'Near', 'Middle', 'Far']
S_PROTO_NUM = 8
T_DIM = 30                    # 998 = 30 + 11*72 + 11*16
S_CH, ST_CH, N_DIR = 72, 16, 11
S_FLAT, ST_FLAT = S_CH * N_DIR, ST_CH * N_DIR    # 792, 176

# Static permutations: the kernels produce channel-major pooled features
# (flat col = c*11 + d); the PyTorch feature / prototype layout is
# direction-major (30 + d*C + c).  Permuting the prototype columns instead of
# transposing the features preserves L2 distances exactly.
_c = np.arange(S_CH).repeat(N_DIR)
_d = np.tile(np.arange(N_DIR), S_CH)
PERM_S = jnp.asarray(T_DIM + _d * S_CH + _c, dtype=jnp.int32)              # (792,)
_c = np.arange(ST_CH).repeat(N_DIR)
_d = np.tile(np.arange(N_DIR), ST_CH)
PERM_ST = jnp.asarray(T_DIM + S_FLAT + _d * ST_CH + _c, dtype=jnp.int32)   # (176,)


def build_direction_masks():
    # TODO(synk): `gussian_mask2` is an undefined module-level global in the
    # reference snippet; deterministic synthetic 9x9 masks are used here with the
    # same usage semantics (elementwise weight on the zero-padded 9x9 map,
    # normalized by the FULL 9x9 mask sum).
    yy, xx = np.meshgrid(np.arange(9) - 4, np.arange(9) - 4, indexing='ij')
    r = np.sqrt(yy.astype(np.float64) ** 2 + xx.astype(np.float64) ** 2)
    g = np.exp(-(r ** 2) / (2.0 * 2.0 ** 2))
    masks = {
        'N': g * (yy < 0), 'S': g * (yy > 0), 'W': g * (xx < 0), 'E': g * (xx > 0),
        'NW': g * ((yy < 0) & (xx < 0)), 'NE': g * ((yy < 0) & (xx > 0)),
        'SW': g * ((yy > 0) & (xx < 0)), 'SE': g * ((yy > 0) & (xx > 0)),
        'Near': (r <= 1.5).astype(np.float64),
        'Middle': ((r > 1.5) & (r <= 3.0)).astype(np.float64),
        'Far': (r > 3.0).astype(np.float64),
    }
    m49 = np.zeros((49, N_DIR), dtype=np.float32)  # 7x7 crop (where the "3" view lands)
    m25 = np.zeros((25, N_DIR), dtype=np.float32)  # 5x5 crop (where the un-padded "5" view lands)
    for d, name in enumerate(ALL_DIRECTIONS):
        m = masks[name]
        s = m.sum()
        m49[:, d] = (m[1:8, 1:8] / s).reshape(49)
        m25[:, d] = (m[2:7, 2:7] / s).reshape(25)
    return jnp.asarray(m49), jnp.asarray(m25)


# ---------------------------------------------------------------------------
# Kernel 1: fused view-merge + directional average pooling (MXU only).
#   rows = (sample, channel), lanes = 74 positions (7x7 | 5x5 concatenated);
#   the sigmoid merge weights are already folded into the (74, 11) masks.
# ---------------------------------------------------------------------------
def pool_kernel(sv_ref, st_ref, wms_ref, wmst_ref, ps_ref, pst_ref):
    ps_ref[...] = jnp.dot(sv_ref[...], wms_ref[...],
                          preferred_element_type=jnp.float32)
    pst_ref[...] = jnp.dot(st_ref[...], wmst_ref[...],
                           preferred_element_type=jnp.float32)


# ---------------------------------------------------------------------------
# Kernel 2: prototype similarities, per-row min/max normalization, FC + softmax.
#   d2 = ||f||^2 + ||p||^2 - 2 f.p  with f.p on the MXU (3 feature groups).
# ---------------------------------------------------------------------------
def proto_head_kernel(t_ref, fs_ref, fst_ref, wt_ref, ws_ref, wst_ref,
                      psq_ref, fcw_ref, probs_ref, sim_ref):
    t, fs, fst = t_ref[...], fs_ref[...], fst_ref[...]
    fp = (jnp.dot(t, wt_ref[...], preferred_element_type=jnp.float32)
          + jnp.dot(fs, ws_ref[...], preferred_element_type=jnp.float32)
          + jnp.dot(fst, wst_ref[...], preferred_element_type=jnp.float32))   # (tn, 8)
    fsq = (jnp.sum(t * t, axis=1, keepdims=True)
           + jnp.sum(fs * fs, axis=1, keepdims=True)
           + jnp.sum(fst * fst, axis=1, keepdims=True))                       # (tn, 1)
    # clamp protects against tiny negative values from the expansion; d2 == 0
    # still yields inf/NaN downstream exactly like 1/cdist in the reference.
    d2 = jnp.maximum(fsq + psq_ref[...] - 2.0 * fp, 0.0)                      # (tn, 8)
    sim = jax.lax.rsqrt(d2)                                                   # 1 / cdist
    shad = sim - jnp.min(sim, axis=1, keepdims=True)
    shad = shad * pl.reciprocal(jnp.max(shad, axis=1, keepdims=True), approx=True)
    sim_ref[...] = shad
    logits = jnp.dot(shad, fcw_ref[...], preferred_element_type=jnp.float32)  # (tn, 2)
    e = jnp.exp(logits - jnp.max(logits, axis=1, keepdims=True))
    probs_ref[...] = e * pl.reciprocal(jnp.sum(e, axis=1, keepdims=True), approx=True)


# ---------------------------------------------------------------------------
# Parameters (deterministic, matching __init__ shapes).
# ---------------------------------------------------------------------------
def init_params(key):
    k1, k2, k3, k4 = jax.random.split(key, 4)
    proto = jax.random.uniform(k1, (S_PROTO_NUM, 998), dtype=jnp.float32)   # torch.rand
    loc_weights = jax.random.uniform(k2, (49,), dtype=jnp.float32)          # torch.rand
    bound = 1.0 / np.sqrt(S_PROTO_NUM)
    fc_w = jax.random.uniform(k3, (2, S_PROTO_NUM), minval=-bound, maxval=bound,
                              dtype=jnp.float32)                            # nn.Linear weight
    qz_loga = jax.random.normal(k4, (S_PROTO_NUM,), dtype=jnp.float32)      # only used by L0 loss
    return dict(proto=proto, loc_weights=loc_weights, fc_w=fc_w, qz_loga=qz_loga)


# ---------------------------------------------------------------------------
# Forward pass (glue + Pallas kernels).
# ---------------------------------------------------------------------------
def protonet_forward(params, spatial_tempoal_view, spatial_view, temporal_view,
                     mask49, mask25):
    b, loc, _ = spatial_view.shape
    n = b * loc

    # ---- raw views -> (rows, 74) channel-major rows (the PyTorch permute;
    #      no 5x5 zero-padding: 7x7 / 5x5 positions stay concatenated on lanes).
    sv = spatial_view.reshape(n, 18, 74, 4).transpose(0, 1, 3, 2).reshape(n * S_CH, 74)
    st = (spatial_tempoal_view.reshape(n, 4, 74, 4)
          .transpose(0, 1, 3, 2).reshape(n * ST_CH, 74))
    t = jnp.broadcast_to(temporal_view[:, None, :], (b, loc, T_DIM)).reshape(n, T_DIM)

    # ---- fold sigmoid(loc_weights) into the pooling masks (tiny, once/call) ---
    w49 = jax.nn.sigmoid(params['loc_weights'])                 # (49,)
    w25 = w49.reshape(7, 7)[1:6, 1:6].reshape(25)               # weights seen by the 5x5 view
    # reference asymmetry: spatial merges w*view5 + (1-w)*view3,
    # spatio-temporal merges w*view3 + (1-w)*view5.
    wm_s = jnp.concatenate([(1.0 - w49)[:, None] * mask49,
                            w25[:, None] * mask25], axis=0)     # (74, 11)
    wm_st = jnp.concatenate([w49[:, None] * mask49,
                             (1.0 - w25)[:, None] * mask25], axis=0)

    # ---- kernel 1: merge + directional pooling, row-tiled over samples --------
    tn1 = n if n <= 128 else 128
    g1 = pl.cdiv(n, tn1)
    pool_s, pool_st = pl.pallas_call(
        pool_kernel,
        out_shape=(jax.ShapeDtypeStruct((n * S_CH, N_DIR), jnp.float32),
                   jax.ShapeDtypeStruct((n * ST_CH, N_DIR), jnp.float32)),
        grid=(g1,),
        in_specs=[pl.BlockSpec((tn1 * S_CH, 74), lambda i: (i, 0)),
                  pl.BlockSpec((tn1 * ST_CH, 74), lambda i: (i, 0)),
                  pl.BlockSpec((74, N_DIR), lambda i: (0, 0)),
                  pl.BlockSpec((74, N_DIR), lambda i: (0, 0))],
        out_specs=(pl.BlockSpec((tn1 * S_CH, N_DIR), lambda i: (i, 0)),
                   pl.BlockSpec((tn1 * ST_CH, N_DIR), lambda i: (i, 0))),
        compiler_params=pltpu.CompilerParams(dimension_semantics=("parallel",)),
    )(sv, st, wm_s, wm_st)

    # channel-major flat features: free reshapes, no transpose/concat/pad between
    # the kernels (the prototype columns are permuted to match instead).
    fs = pool_s.reshape(n, S_FLAT)       # (n, 792), col = c*11 + d
    fst = pool_st.reshape(n, ST_FLAT)    # (n, 176)

    proto = params['proto']
    wt = proto[:, :T_DIM].T                         # (30, 8)
    ws = proto[:, PERM_S].T                         # (792, 8) channel-major
    wst = proto[:, PERM_ST].T                       # (176, 8) channel-major
    psq = jnp.sum(proto * proto, axis=1)[None, :]   # (1, 8)
    fcwT = params['fc_w'].T                         # (8, 2)

    # ---- kernel 2: prototype similarity head, row-tiled over samples ----------
    tn2 = n if n <= 512 else 512
    g2 = pl.cdiv(n, tn2)
    probs, spatial_proto = pl.pallas_call(
        proto_head_kernel,
        out_shape=(jax.ShapeDtypeStruct((n, 2), jnp.float32),
                   jax.ShapeDtypeStruct((n, S_PROTO_NUM), jnp.float32)),
        grid=(g2,),
        in_specs=[pl.BlockSpec((tn2, T_DIM), lambda i: (i, 0)),
                  pl.BlockSpec((tn2, S_FLAT), lambda i: (i, 0)),
                  pl.BlockSpec((tn2, ST_FLAT), lambda i: (i, 0)),
                  pl.BlockSpec((T_DIM, S_PROTO_NUM), lambda i: (0, 0)),
                  pl.BlockSpec((S_FLAT, S_PROTO_NUM), lambda i: (0, 0)),
                  pl.BlockSpec((ST_FLAT, S_PROTO_NUM), lambda i: (0, 0)),
                  pl.BlockSpec((1, S_PROTO_NUM), lambda i: (0, 0)),
                  pl.BlockSpec((S_PROTO_NUM, 2), lambda i: (0, 0))],
        out_specs=(pl.BlockSpec((tn2, 2), lambda i: (i, 0)),
                   pl.BlockSpec((tn2, S_PROTO_NUM), lambda i: (i, 0))),
        compiler_params=pltpu.CompilerParams(dimension_semantics=("parallel",)),
    )(t, fs, fst, wt, ws, wst, psq, fcwT)

    # ---- returned encodings in the reference (direction-major) layout ---------
    # (output-side only; not on the compute critical path)
    s_encd = pool_s.reshape(n, S_CH, N_DIR).transpose(0, 2, 1).reshape(n, S_FLAT)
    st_encd = pool_st.reshape(n, ST_CH, N_DIR).transpose(0, 2, 1).reshape(n, ST_FLAT)
    t_encd = t

    # ---- prototype diversity loss (tiny, plain JAX) ----------------------------
    pd = proto[:, None, :] - proto[None, :, :]
    pdist = jnp.sqrt(jnp.sum(pd * pd, axis=-1))            # (8, 8), diagonal = 0
    ctr = S_PROTO_NUM * (S_PROTO_NUM - 1)
    loss_diver = (-jnp.sum(pdist) / ctr).reshape(1, 1)

    res = jnp.ones((860,), dtype=jnp.float32)
    # Note: the loss_l0 / qz_loga path is computed but never returned by the
    # reference forward(), so it is omitted here.
    return (probs, 0, spatial_proto, (st_encd, t_encd, s_encd, res), loss_diver)


if __name__ == "__main__":
    key = jax.random.PRNGKey(0)
    kp, ki = jax.random.split(key)
    params = init_params(kp)
    mask49, mask25 = build_direction_masks()

    b, loc = 2, 3
    k1, k2, k3 = jax.random.split(ki, 3)
    spatial_tempoal_view = jax.random.normal(k1, (b, loc, 4 * 74 * 4), dtype=jnp.float32)
    spatial_view = jax.random.normal(k2, (b, loc, 18 * 74 * 4), dtype=jnp.float32)
    temporal_view = jax.random.normal(k3, (b, T_DIM), dtype=jnp.float32)

    fwd = jax.jit(protonet_forward)
    out = fwd(params, spatial_tempoal_view, spatial_view, temporal_view, mask49, mask25)
    jax.tree_util.tree_map(
        lambda x: jax.block_until_ready(x) if isinstance(x, jax.Array) else x, out)
    print("KERNEL_OK")
</pallas_src>

<mosaic_0001>
module attributes {stable_mosaic.version = 11 : i64} {
  func.func @pool_kernel(%arg0: i32, %arg1: memref<432x74xf32, #tpu.memory_space<vmem>>, %arg2: memref<96x74xf32, #tpu.memory_space<vmem>>, %arg3: memref<74x11xf32, #tpu.memory_space<vmem>>, %arg4: memref<74x11xf32, #tpu.memory_space<vmem>>, %arg5: memref<432x11xf32, #tpu.memory_space<vmem>>, %arg6: memref<96x11xf32, #tpu.memory_space<vmem>>) attributes {dimension_semantics = [#tpu.dimension_semantics<parallel>], iteration_bounds = array<i64: 1>, scalar_prefetch = 0 : i64, scratch_operands = 0 : i64, tpu.core_type = #tpu.core_type<tc>, window_params = [{transform_indices = @transform_0, window_bounds = array<i64: 432, 74>}, {transform_indices = @transform_1, window_bounds = array<i64: 96, 74>}, {pipeline_mode = #tpu.pipeline_mode<synchronous>, transform_indices = @transform_2, window_bounds = array<i64: 74, 11>}, {pipeline_mode = #tpu.pipeline_mode<synchronous>, transform_indices = @transform_3, window_bounds = array<i64: 74, 11>}, {transform_indices = @transform_4, window_bounds = array<i64: 432, 11>}, {transform_indices = @transform_5, window_bounds = array<i64: 96, 11>}]} {
    %c0 = arith.constant 0 : index
    %c0_0 = arith.constant 0 : index
    %0 = vector.load %arg1[%c0, %c0_0] : memref<432x74xf32, #tpu.memory_space<vmem>>, vector<432x74xf32>
    %c0_1 = arith.constant 0 : index
    %c0_2 = arith.constant 0 : index
    %1 = vector.load %arg3[%c0_1, %c0_2] : memref<74x11xf32, #tpu.memory_space<vmem>>, vector<74x11xf32>
    %cst = arith.constant dense<0.000000e+00> : vector<432x11xf32>
    %2 = tpu.matmul %0, %1, %cst {dimension_numbers = #tpu.dot_dimension_numbers<[1], [0], [0], [1], [0, 0, 1, 1], [], []>} : vector<432x74xf32>, vector<74x11xf32>, vector<432x11xf32> -> vector<432x11xf32>
    %c0_3 = arith.constant 0 : index
    %c0_4 = arith.constant 0 : index
    %3 = vector.load %arg5[%c0_3, %c0_4] : memref<432x11xf32, #tpu.memory_space<vmem>>, vector<432x11xf32>
    tpu.vector_store %arg5[%c0_3, %c0_4], %2 {strides = array<i32>} : memref<432x11xf32, #tpu.memory_space<vmem>>, vector<432x11xf32>,
    %c0_5 = arith.constant 0 : index
    %c0_6 = arith.constant 0 : index
    %4 = vector.load %arg2[%c0_5, %c0_6] : memref<96x74xf32, #tpu.memory_space<vmem>>, vector<96x74xf32>
    %c0_7 = arith.constant 0 : index
    %c0_8 = arith.constant 0 : index
    %5 = vector.load %arg4[%c0_7, %c0_8] : memref<74x11xf32, #tpu.memory_space<vmem>>, vector<74x11xf32>
    %cst_9 = arith.constant dense<0.000000e+00> : vector<96x11xf32>
    %6 = tpu.matmul %4, %5, %cst_9 {dimension_numbers = #tpu.dot_dimension_numbers<[1], [0], [0], [1], [0, 0, 1, 1], [], []>} : vector<96x74xf32>, vector<74x11xf32>, vector<96x11xf32> -> vector<96x11xf32>
    %c0_10 = arith.constant 0 : index
    %c0_11 = arith.constant 0 : index
    %7 = vector.load %arg6[%c0_10, %c0_11] : memref<96x11xf32, #tpu.memory_space<vmem>>, vector<96x11xf32>
    tpu.vector_store %arg6[%c0_10, %c0_11], %6 {strides = array<i32>} : memref<96x11xf32, #tpu.memory_space<vmem>>, vector<96x11xf32>,
    return
  }
  func.func @transform_0(%arg0: i32) -> (i32, i32) {
    %c0_i32 = arith.constant 0 : i32
    %c0_i32_0 = arith.constant 0 : i32
    return %arg0, %c0_i32 : i32, i32
  }
  func.func @transform_1(%arg0: i32) -> (i32, i32) {
    %c0_i32 = arith.constant 0 : i32
    %c0_i32_0 = arith.constant 0 : i32
    return %arg0, %c0_i32 : i32, i32
  }
  func.func @transform_2(%arg0: i32) -> (i32, i32) {
    %c0_i32 = arith.constant 0 : i32
    %c0_i32_0 = arith.constant 0 : i32
    %c0_i32_1 = arith.constant 0 : i32
    return %c0_i32, %c0_i32_0 : i32, i32
  }
  func.func @transform_3(%arg0: i32) -> (i32, i32) {
    %c0_i32 = arith.constant 0 : i32
    %c0_i32_0 = arith.constant 0 : i32
    %c0_i32_1 = arith.constant 0 : i32
    return %c0_i32, %c0_i32_0 : i32, i32
  }
  func.func @transform_4(%arg0: i32) -> (i32, i32) {
    %c0_i32 = arith.constant 0 : i32
    %c0_i32_0 = arith.constant 0 : i32
    return %arg0, %c0_i32 : i32, i32
  }
  func.func @transform_5(%arg0: i32) -> (i32, i32) {
    %c0_i32 = arith.constant 0 : i32
    %c0_i32_0 = arith.constant 0 : i32
    return %arg0, %c0_i32 : i32, i32
  }
}

module attributes {stable_mosaic.version = 11 : i64} {
  func.func @proto_head_kernel(%arg0: i32, %arg1: memref<6x30xf32, #tpu.memory_space<vmem>>, %arg2: memref<6x792xf32, #tpu.memory_space<vmem>>, %arg3: memref<6x176xf32, #tpu.memory_space<vmem>>, %arg4: memref<30x8xf32, #tpu.memory_space<vmem>>, %arg5: memref<792x8xf32, #tpu.memory_space<vmem>>, %arg6: memref<176x8xf32, #tpu.memory_space<vmem>>, %arg7: memref<1x8xf32, #tpu.memory_space<vmem>>, %arg8: memref<8x2xf32, #tpu.memory_space<vmem>>, %arg9: memref<6x2xf32, #tpu.memory_space<vmem>>, %arg10: memref<6x8xf32, #tpu.memory_space<vmem>>) attributes {dimension_semantics = [#tpu.dimension_semantics<parallel>], iteration_bounds = array<i64: 1>, scalar_prefetch = 0 : i64, scratch_operands = 0 : i64, tpu.core_type = #tpu.core_type<tc>, window_params = [{transform_indices = @transform_0, window_bounds = array<i64: 6, 30>}, {transform_indices = @transform_1, window_bounds = array<i64: 6, 792>}, {transform_indices = @transform_2, window_bounds = array<i64: 6, 176>}, {pipeline_mode = #tpu.pipeline_mode<synchronous>, transform_indices = @transform_3, window_bounds = array<i64: 30, 8>}, {pipeline_mode = #tpu.pipeline_mode<synchronous>, transform_indices = @transform_4, window_bounds = array<i64: 792, 8>}, {pipeline_mode = #tpu.pipeline_mode<synchronous>, transform_indices = @transform_5, window_bounds = array<i64: 176, 8>}, {pipeline_mode = #tpu.pipeline_mode<synchronous>, transform_indices = @transform_6, window_bounds = array<i64: 1, 8>}, {pipeline_mode = #tpu.pipeline_mode<synchronous>, transform_indices = @transform_7, window_bounds = array<i64: 8, 2>}, {transform_indices = @transform_8, window_bounds = array<i64: 6, 2>}, {transform_indices = @transform_9, window_bounds = array<i64: 6, 8>}]} {
    %c0 = arith.constant 0 : index
    %c0_0 = arith.constant 0 : index
    %0 = vector.load %arg1[%c0, %c0_0] : memref<6x30xf32, #tpu.memory_space<vmem>>, vector<6x30xf32>
    %c0_1 = arith.constant 0 : index
    %c0_2 = arith.constant 0 : index
    %1 = vector.load %arg2[%c0_1, %c0_2] : memref<6x792xf32, #tpu.memory_space<vmem>>, vector<6x792xf32>
    %c0_3 = arith.constant 0 : index
    %c0_4 = arith.constant 0 : index
    %2 = vector.load %arg3[%c0_3, %c0_4] : memref<6x176xf32, #tpu.memory_space<vmem>>, vector<6x176xf32>
    %c0_5 = arith.constant 0 : index
    %c0_6 = arith.constant 0 : index
    %3 = vector.load %arg4[%c0_5, %c0_6] : memref<30x8xf32, #tpu.memory_space<vmem>>, vector<30x8xf32>
    %cst = arith.constant dense<0.000000e+00> : vector<6x8xf32>
    %4 = tpu.matmul %0, %3, %cst {dimension_numbers = #tpu.dot_dimension_numbers<[1], [0], [0], [1], [0, 0, 1, 1], [], []>} : vector<6x30xf32>, vector<30x8xf32>, vector<6x8xf32> -> vector<6x8xf32>
    %c0_7 = arith.constant 0 : index
    %c0_8 = arith.constant 0 : index
    %5 = vector.load %arg5[%c0_7, %c0_8] : memref<792x8xf32, #tpu.memory_space<vmem>>, vector<792x8xf32>
    %cst_9 = arith.constant dense<0.000000e+00> : vector<6x8xf32>
    %6 = tpu.matmul %1, %5, %cst_9 {dimension_numbers = #tpu.dot_dimension_numbers<[1], [0], [0], [1], [0, 0, 1, 1], [], []>} : vector<6x792xf32>, vector<792x8xf32>, vector<6x8xf32> -> vector<6x8xf32>
    %7 = arith.addf %4, %6 : vector<6x8xf32>
    %c0_10 = arith.constant 0 : index
    %c0_11 = arith.constant 0 : index
    %8 = vector.load %arg6[%c0_10, %c0_11] : memref<176x8xf32, #tpu.memory_space<vmem>>, vector<176x8xf32>
    %cst_12 = arith.constant dense<0.000000e+00> : vector<6x8xf32>
    %9 = tpu.matmul %2, %8, %cst_12 {dimension_numbers = #tpu.dot_dimension_numbers<[1], [0], [0], [1], [0, 0, 1, 1], [], []>} : vector<6x176xf32>, vector<176x8xf32>, vector<6x8xf32> -> vector<6x8xf32>
    %10 = arith.addf %7, %9 : vector<6x8xf32>
    %11 = arith.mulf %0, %0 : vector<6x30xf32>
    %cst_13 = arith.constant dense<0.000000e+00> : vector<6xf32>
    %12 = vector.multi_reduction <add>, %11, %cst_13 [1] : vector<6x30xf32> to vector<6xf32>
    %13 = vector.shape_cast %12 : vector<6xf32> to vector<6x1xf32>
    %14 = arith.mulf %1, %1 : vector<6x792xf32>
    %cst_14 = arith.constant dense<0.000000e+00> : vector<6xf32>
    %15 = vector.multi_reduction <add>, %14, %cst_14 [1] : vector<6x792xf32> to vector<6xf32>
    %16 = vector.shape_cast %15 : vector<6xf32> to vector<6x1xf32>
    %17 = arith.addf %13, %16 : vector<6x1xf32>
    %18 = arith.mulf %2, %2 : vector<6x176xf32>
    %cst_15 = arith.constant dense<0.000000e+00> : vector<6xf32>
    %19 = vector.multi_reduction <add>, %18, %cst_15 [1] : vector<6x176xf32> to vector<6xf32>
    %20 = vector.shape_cast %19 : vector<6xf32> to vector<6x1xf32>
    %21 = arith.addf %17, %20 : vector<6x1xf32>
    %c0_16 = arith.constant 0 : index
    %c0_17 = arith.constant 0 : index
    %22 = vector.load %arg7[%c0_16, %c0_17] : memref<1x8xf32, #tpu.memory_space<vmem>>, vector<1x8xf32>
    %23 = vector.broadcast %21 : vector<6x1xf32> to vector<6x8xf32>
    %24 = vector.broadcast %22 : vector<1x8xf32> to vector<6x8xf32>
    %25 = arith.addf %23, %24 : vector<6x8xf32>
    %cst_18 = arith.constant 2.000000e+00 : f32
    %26 = vector.broadcast %cst_18 : f32 to vector<6x8xf32>
    %27 = arith.mulf %26, %10 : vector<6x8xf32>
    %28 = arith.subf %25, %27 : vector<6x8xf32>
    %cst_19 = arith.constant 0.000000e+00 : f32
    %29 = vector.broadcast %cst_19 : f32 to vector<6x8xf32>
    %30 = arith.maximumf %28, %29 : vector<6x8xf32>
    %31 = math.rsqrt %30 : vector<6x8xf32>
    %cst_20 = arith.constant dense<0x7F800000> : vector<6xf32>
    %32 = vector.multi_reduction <minimumf>, %31, %cst_20 [1] : vector<6x8xf32> to vector<6xf32>
    %33 = vector.shape_cast %32 : vector<6xf32> to vector<6x1xf32>
    %34 = vector.broadcast %33 : vector<6x1xf32> to vector<6x8xf32>
    %35 = arith.subf %31, %34 : vector<6x8xf32>
    %cst_21 = arith.constant dense<0xFF800000> : vector<6xf32>
    %36 = vector.multi_reduction <maximumf>, %35, %cst_21 [1] : vector<6x8xf32> to vector<6xf32>
    %37 = vector.shape_cast %36 : vector<6xf32> to vector<6x1xf32>
    %38 = tpu.reciprocal %37 {approx = true} : vector<6x1xf32> -> vector<6x1xf32>
    %39 = vector.broadcast %38 : vector<6x1xf32> to vector<6x8xf32>
    %40 = arith.mulf %35, %39 : vector<6x8xf32>
    %c0_22 = arith.constant 0 : index
    %c0_23 = arith.constant 0 : index
    %41 = vector.load %arg10[%c0_22, %c0_23] : memref<6x8xf32, #tpu.memory_space<vmem>>, vector<6x8xf32>
    tpu.vector_store %arg10[%c0_22, %c0_23], %40 {strides = array<i32>} : memref<6x8xf32, #tpu.memory_space<vmem>>, vector<6x8xf32>,
    %c0_24 = arith.constant 0 : index
    %c0_25 = arith.constant 0 : index
    %42 = vector.load %arg8[%c0_24, %c0_25] : memref<8x2xf32, #tpu.memory_space<vmem>>, vector<8x2xf32>
    %cst_26 = arith.constant dense<0.000000e+00> : vector<6x2xf32>
    %43 = tpu.matmul %40, %42, %cst_26 {dimension_numbers = #tpu.dot_dimension_numbers<[1], [0], [0], [1], [0, 0, 1, 1], [], []>} : vector<6x8xf32>, vector<8x2xf32>, vector<6x2xf32> -> vector<6x2xf32>
    %cst_27 = arith.constant dense<0xFF800000> : vector<6xf32>
    %44 = vector.multi_reduction <maximumf>, %43, %cst_27 [1] : vector<6x2xf32> to vector<6xf32>
    %45 = vector.shape_cast %44 : vector<6xf32> to vector<6x1xf32>
    %46 = vector.broadcast %45 : vector<6x1xf32> to vector<6x2xf32>
    %47 = arith.subf %43, %46 : vector<6x2xf32>
    %48 = math.exp %47 : vector<6x2xf32>
    %cst_28 = arith.constant dense<0.000000e+00> : vector<6xf32>
    %49 = vector.multi_reduction <add>, %48, %cst_28 [1] : vector<6x2xf32> to vector<6xf32>
    %50 = vector.shape_cast %49 : vector<6xf32> to vector<6x1xf32>
    %51 = tpu.reciprocal %50 {approx = true} : vector<6x1xf32> -> vector<6x1xf32>
    %52 = vector.broadcast %51 : vector<6x1xf32> to vector<6x2xf32>
    %53 = arith.mulf %48, %52 : vector<6x2xf32>
    %c0_29 = arith.constant 0 : index
    %c0_30 = arith.constant 0 : index
    %54 = vector.load %arg9[%c0_29, %c0_30] : memref<6x2xf32, #tpu.memory_space<vmem>>, vector<6x2xf32>
    tpu.vector_store %arg9[%c0_29, %c0_30], %53 {strides = array<i32>} : memref<6x2xf32, #tpu.memory_space<vmem>>, vector<6x2xf32>,
    return
  }
  func.func @transform_0(%arg0: i32) -> (i32, i32) {
    %c0_i32 = arith.constant 0 : i32
    %c0_i32_0 = arith.constant 0 : i32
    return %arg0, %c0_i32 : i32, i32
  }
  func.func @transform_1(%arg0: i32) -> (i32, i32) {
    %c0_i32 = arith.constant 0 : i32
    %c0_i32_0 = arith.constant 0 : i32
    return %arg0, %c0_i32 : i32, i32
  }
  func.func @transform_2(%arg0: i32) -> (i32, i32) {
    %c0_i32 = arith.constant 0 : i32
    %c0_i32_0 = arith.constant 0 : i32
    return %arg0, %c0_i32 : i32, i32
  }
  func.func @transform_3(%arg0: i32) -> (i32, i32) {
    %c0_i32 = arith.constant 0 : i32
    %c0_i32_0 = arith.constant 0 : i32
    %c0_i32_1 = arith.constant 0 : i32
    return %c0_i32, %c0_i32_0 : i32, i32
  }
  func.func @transform_4(%arg0: i32) -> (i32, i32) {
    %c0_i32 = arith.constant 0 : i32
    %c0_i32_0 = arith.constant 0 : i32
    %c0_i32_1 = arith.constant 0 : i32
    return %c0_i32, %c0_i32_0 : i32, i32
  }
  func.func @transform_5(%arg0: i32) -> (i32, i32) {
    %c0_i32 = arith.constant 0 : i32
    %c0_i32_0 = arith.constant 0 : i32
    %c0_i32_1 = arith.constant 0 : i32
    return %c0_i32, %c0_i32_0 : i32, i32
  }
  func.func @transform_6(%arg0: i32) -> (i32, i32) {
    %c0_i32 = arith.constant 0 : i32
    %c0_i32_0 = arith.constant 0 : i32
    %c0_i32_1 = arith.constant 0 : i32
    return %c0_i32, %c0_i32_0 : i32, i32
  }
  func.func @transform_7(%arg0: i32) -> (i32, i32) {
    %c0_i32 = arith.constant 0 : i32
    %c0_i32_0 = arith.constant 0 : i32
    %c0_i32_1 = arith.constant 0 : i32
    return %c0_i32, %c0_i32_0 : i32, i32
  }
  func.func @transform_8(%arg0: i32) -> (i32, i32) {
    %c0_i32 = arith.constant 0 : i32
    %c0_i32_0 = arith.constant 0 : i32
    return %arg0, %c0_i32 : i32, i32
  }
  func.func @transform_9(%arg0: i32) -> (i32, i32) {
    %c0_i32 = arith.constant 0 : i32
    %c0_i32_0 = arith.constant 0 : i32
    return %arg0, %c0_i32 : i32, i32
  }
}

</mosaic_0001>

<llo_original>
// kernel: mul.23
$region0: #{mul.23}
  %s0 = inlined_call_operand.vmem [shape: f32[5,5], index: 0, kind: input, shape index: {}]
  %s1 = inlined_call_operand.vmem [shape: f32[25], index: 1, kind: output, shape index: {}]
  $region1: #{mul.23} parent=0
    #allocation0 [shape = 'u8[4096]{0}', space=vmem, size = 0x1000, scoped, tag = 'scoped mem for output reshape']
    %v2 = vld [vmem:[%s0] sm:$0x1]
    %vm3 = vcmask 39936
    %4 = vst.msk [vmem:[#allocation0] sm:$0x1] %vm3, %v2
    %s5 = scalar_lea.vmem %s0, 4
    %v6 = vld [vmem:[%s5] sm:$0x1]
    %7 = vrot.lane.b32.xlu0 %v6, 20
    %v8 = vpop.permute.xlu0 %7
    %vm9 = vcmask 203936
    %10 = vst.msk [vmem:[#allocation0] sm:$0x1] %vm9, %v8
    %s11 = scalar_lea.vmem %s0, 3
    %v12 = vld [vmem:[%s11] sm:$0x1]
    %13 = vrot.lane.b32.xlu0 %v12, 15
    %v14 = vpop.permute.xlu0 %13
    %vm15 = vcmask 162936
    %16 = vst.msk [vmem:[#allocation0] sm:$0x1] %vm15, %v14
    %s17 = scalar_lea.vmem %s0, 2
    %v18 = vld [vmem:[%s17] sm:$0x1]
    %19 = vrot.lane.b32.xlu0 %v18, 10
    %v20 = vpop.permute.xlu0 %19
    %vm21 = vcmask 121936
    %22 = vst.msk [vmem:[#allocation0] sm:$0x1] %vm21, %v20
    %s23 = scalar_lea.vmem %s0, 1
    %v24 = vld [vmem:[%s23] sm:$0x1]
    %25 = vrot.lane.b32.xlu0 %v24, 5
    %v26 = vpop.permute.xlu0 %25
    %vm27 = vcmask 80936
    %28 = vst.msk [vmem:[#allocation0] sm:$0x1] %vm27, %v26
    %s30 = ssub.s32 2, 1
    %v31 = vld [vmem:[#allocation0] sm:%s30]
    %s33 = ssub.s32 2, 1
    %34 = vst [vmem:[%s1] sm:%s33] %v31

// kernel: protonet_forward.2
$region0: #{protonet_forward.2}
  #allocation0 [shape = 'u32[]', space=smem, size = 0x4, offset = 0x4, fixed_abs, tag = 'smem constant byte address 0x4 - core index']
  #allocation1 [shape = 'u32[72,128]{1,0:T(1,128)}', space=vmem, size = 0x9000, scoped, tag = 'internal scratch']
  %s0 = inlined_call_operand.vmem [shape: f32[432,74], index: 0, kind: input, shape index: {}]
  %s1 = inlined_call_operand.vmem [shape: f32[96,74], index: 1, kind: input, shape index: {}]
  %s2 = inlined_call_operand.vmem [shape: f32[74,11], index: 2, kind: input, shape index: {}]
  %s3 = inlined_call_operand.vmem [shape: f32[74,11], index: 3, kind: input, shape index: {}]
  %s4 = inlined_call_operand.vmem [shape: f32[432,11], index: 4, kind: output, shape index: {0}]
  %s5 = inlined_call_operand.vmem [shape: f32[96,11], index: 5, kind: output, shape index: {1}]
  %6 = xla_tuple %s4, %s5
  %s7 = sld [smem:[#allocation0]]
  $region34: #{protonet_forward.2} parent=0
    _
  %s9 = ssub.s32 1, %s7
  %s10 = scalar_select 0, %s9, %s7
  // Predicated region
  $region2: #{protonet_forward.2} parent=0 // pred_check
    _
  $region3: #{protonet_forward.2} parent=0 // pred_check_branch
    %12 = sbr.rel (0) target = $region5
  $region4: #{protonet_forward.2} parent=0 // pred_region
    _
  $region5: #{protonet_forward.2} parent=0 // pred_fallthru
    _
  // Predicated region
  $region6: #{protonet_forward.2} parent=0 // pred_check
    _
  $region7: #{protonet_forward.2} parent=0 // pred_check_branch
    %14 = sbr.rel (0) target = $region9
  $region8: #{protonet_forward.2} parent=0 // pred_region
    _
  $region9: #{protonet_forward.2} parent=0 // pred_fallthru
    _
  // Predicated region
  $region10: #{protonet_forward.2} parent=0 // pred_check
    _
  $region11: #{protonet_forward.2} parent=0 // pred_check_branch
    %16 = sbr.rel (0) target = $region13
  $region12: #{protonet_forward.2} parent=0 // pred_region
    _
  $region13: #{protonet_forward.2} parent=0 // pred_fallthru
    _
  // Predicated region
  $region14: #{protonet_forward.2} parent=0 // pred_check
    _
  $region15: #{protonet_forward.2} parent=0 // pred_check_branch
    %18 = sbr.rel (0) target = $region17
  $region16: #{protonet_forward.2} parent=0 // pred_region
    _
  $region17: #{protonet_forward.2} parent=0 // pred_fallthru
    _
  %v19 = vld [vmem:[%s0] sm:$0xff]
  %v20 = vld [vmem:[%s0 + $0x8] sm:$0xff]
  %v21 = vld [vmem:[%s0 + $0x10] sm:$0xff]
  %v22 = vld [vmem:[%s0 + $0x18] sm:$0xff]
  %v23 = vld [vmem:[%s0 + $0x20] sm:$0xff]
  %v24 = vld [vmem:[%s0 + $0x28] sm:$0xff]
  %v25 = vld [vmem:[%s0 + $0x30] sm:$0xff]
  %v26 = vld [vmem:[%s0 + $0x38] sm:$0xff]
  %v27 = vld [vmem:[%s0 + $0x40] sm:$0xff]
  %v28 = vld [vmem:[%s0 + $0x48] sm:$0xff]
  %v29 = vld [vmem:[%s0 + $0x50] sm:$0xff]
  %v30 = vld [vmem:[%s0 + $0x58] sm:$0xff]
  %v31 = vld [vmem:[%s0 + $0x60] sm:$0xff]
  %v32 = vld [vmem:[%s0 + $0x68] sm:$0xff]
  %v33 = vld [vmem:[%s0 + $0x70] sm:$0xff]
  %v34 = vld [vmem:[%s0 + $0x78] sm:$0xff]
  %v35 = vld [vmem:[%s0 + $0x80] sm:$0xff]
  %v36 = vld [vmem:[%s0 + $0x88] sm:$0xff]
  %v37 = vld [vmem:[%s0 + $0x90] sm:$0xff]
  %v38 = vld [vmem:[%s0 + $0x98] sm:$0xff]
  %v39 = vld [vmem:[%s0 + $0xa0] sm:$0xff]
  %v40 = vld [vmem:[%s0 + $0xa8] sm:$0xff]
  %v41 = vld [vmem:[%s0 + $0xb0] sm:$0xff]
  %v42 = vld [vmem:[%s0 + $0xb8] sm:$0xff]
  %v43 = vld [vmem:[%s0 + $0xc0] sm:$0xff]
  %v44 = vld [vmem:[%s0 + $0xc8] sm:$0xff]
  %v45 = vld [vmem:[%s0 + $0xd0] sm:$0xff]
  %v46 = vld [vmem:[%s0 + $0xd8] sm:$0xff]
  %v47 = vld [vmem:[%s0 + $0xe0] sm:$0xff]
  %v48 = vld [vmem:[%s0 + $0xe8] sm:$0xff]
  %v49 = vld [vmem:[%s0 + $0xf0] sm:$0xff]
  %v50 = vld [vmem:[%s0 + $0xf8] sm:$0xff]
  %v51 = vld [vmem:[%s0 + $0x100] sm:$0xff]
  %v52 = vld [vmem:[%s0 + $0x108] sm:$0xff]
  %v53 = vld [vmem:[%s0 + $0x110] sm:$0xff]
  %v54 = vld [vmem:[%s0 + $0x118] sm:$0xff]
  %v55 = vld [vmem:[%s0 + $0x120] sm:$0xff]
  %v56 = vld [vmem:[%s0 + $0x128] sm:$0xff]
  %v57 = vld [vmem:[%s0 + $0x130] sm:$0xff]
  %v58 = vld [vmem:[%s0 + $0x138] sm:$0xff]
  %v59 = vld [vmem:[%s0 + $0x140] sm:$0xff]
  %v60 = vld [vmem:[%s0 + $0x148] sm:$0xff]
  %v61 = vld [vmem:[%s0 + $0x150] sm:$0xff]
  %v62 = vld [vmem:[%s0 + $0x158] sm:$0xff]
  %v63 = vld [vmem:[%s0 + $0x160] sm:$0xff]
  %v64 = vld [vmem:[%s0 + $0x168] sm:$0xff]
  %v65 = vld [vmem:[%s0 + $0x170] sm:$0xff]
  %v66 = vld [vmem:[%s0 + $0x178] sm:$0xff]
  %v67 = vld [vmem:[%s0 + $0x180] sm:$0xff]
  %v68 = vld [vmem:[%s0 + $0x188] sm:$0xff]
  %v69 = vld [vmem:[%s0 + $0x190] sm:$0xff]
  %v70 = vld [vmem:[%s0 + $0x198] sm:$0xff]
  %v71 = vld [vmem:[%s0 + $0x1a0] sm:$0xff]
  %v72 = vld [vmem:[%s0 + $0x1a8] sm:$0xff]
  %v73 = vld [vmem:[%s2] sm:$0xff]
  %v74 = vld [vmem:[%s2 + $0x8] sm:$0xff]
  %v75 = vld [vmem:[%s2 + $0x10] sm:$0xff]
  %v76 = vld [vmem:[%s2 + $0x18] sm:$0xff]
  %v77 = vld [vmem:[%s2 + $0x20] sm:$0xff]
  %v78 = vld [vmem:[%s2 + $0x28] sm:$0xff]
  %v79 = vld [vmem:[%s2 + $0x30] sm:$0xff]
  %v80 = vld [vmem:[%s2 + $0x38] sm:$0xff]
  %v81 = vld [vmem:[%s2 + $0x40] sm:$0xff]
  %v82 = vld [vmem:[%s2 + $0x48] sm:$0x3]
  %vm83 = vcmask 605184
  %v85 = vsel %vm83, %v19, 0
  %v88 = vsel %vm83, %v20, 0
  %v91 = vsel %vm83, %v21, 0
  %v94 = vsel %vm83, %v22, 0
  %v97 = vsel %vm83, %v23, 0
  %v100 = vsel %vm83, %v24, 0
  %v103 = vsel %vm83, %v25, 0
  %v106 = vsel %vm83, %v26, 0
  %v109 = vsel %vm83, %v27, 0
  %v112 = vsel %vm83, %v28, 0
  %v115 = vsel %vm83, %v29, 0
  %v118 = vsel %vm83, %v30, 0
  %v121 = vsel %vm83, %v31, 0
  %v124 = vsel %vm83, %v32, 0
  %v127 = vsel %vm83, %v33, 0
  %v130 = vsel %vm83, %v34, 0
  %v133 = vsel %vm83, %v35, 0
  %v136 = vsel %vm83, %v36, 0
  %v139 = vsel %vm83, %v37, 0
  %v142 = vsel %vm83, %v38, 0
  %v145 = vsel %vm83, %v39, 0
  %v148 = vsel %vm83, %v40, 0
  %v151 = vsel %vm83, %v41, 0
  %v154 = vsel %vm83, %v42, 0
  %v157 = vsel %vm83, %v43, 0
  %v160 = vsel %vm83, %v44, 0
  %v163 = vsel %vm83, %v45, 0
  %v166 = vsel %vm83, %v46, 0
  %v169 = vsel %vm83, %v47, 0
  %v172 = vsel %vm83, %v48, 0
  %v175 = vsel %vm83, %v49, 0
  %v178 = vsel %vm83, %v50, 0
  %v181 = vsel %vm83, %v51, 0
  %v184 = vsel %vm83, %v52, 0
  %v187 = vsel %vm83, %v53, 0
  %v190 = vsel %vm83, %v54, 0
  %v193 = vsel %vm83, %v55, 0
  %v196 = vsel %vm83, %v56, 0
  %v199 = vsel %vm83, %v57, 0
  %v202 = vsel %vm83, %v58, 0
  %v205 = vsel %vm83, %v59, 0
  %v208 = vsel %vm83, %v60, 0
  %v211 = vsel %vm83, %v61, 0
  %v214 = vsel %vm83, %v62, 0
  %v217 = vsel %vm83, %v63, 0
  %v220 = vsel %vm83, %v64, 0
  %v223 = vsel %vm83, %v65, 0
  %v226 = vsel %vm83, %v66, 0
  %v229 = vsel %vm83, %v67, 0
  %v232 = vsel %vm83, %v68, 0
  %v235 = vsel %vm83, %v69, 0
  %v238 = vsel %vm83, %v70, 0
  %v241 = vsel %vm83, %v71, 0
  %v244 = vsel %vm83, %v72, 0
  %vm246 = vcmask 1041408
  %v248 = vsel %vm246, %v82, 0
  %250 = vmatpush.msra.mxu0 0.0
  %251 = vmatpush.msra.mxu0 0.0
  %252 = vmatpush.msra.mxu0 0.0
  %253 = vmatpush.msra.mxu0 0.0
  %254 = vmatpush.msra.mxu0 0.0
  %255 = vmatpush.msra.mxu0 0.0
  %256 = vmatpush.msra.mxu0 %v248
  %257 = vmatpush.msra.mxu0 %v81
  %258 = vmatpush.msra.mxu0 %v80
  %259 = vmatpush.msra.mxu0 %v79
  %260 = vmatpush.msra.mxu0 %v78
  %261 = vmatpush.msra.mxu0 %v77
  %262 = vmatpush.msra.mxu0 %v76
  %263 = vmatpush.msra.mxu0 %v75
  %264 = vmatpush.msra.mxu0 %v74
  %265 = vmatpush.msra.mxu0 %v73
  %266 = vmatmul.f32.gmra.mxu0 %v85
  %v267 = vpop.f32.mrf.mxu0
  %v268 = vadd.f32 0.0, %v267
  %269 = vmatmul.f32.gmra.mxu0 %v88
  %v270 = vpop.f32.mrf.mxu0
  %v271 = vadd.f32 0.0, %v270
  %272 = vmatmul.f32.gmra.mxu0 %v91
  %v273 = vpop.f32.mrf.mxu0
  %v274 = vadd.f32 0.0, %v273
  %275 = vmatmul.f32.gmra.mxu0 %v94
  %v276 = vpop.f32.mrf.mxu0
  %v277 = vadd.f32 0.0, %v276
  %278 = vmatmul.f32.gmra.mxu0 %v97
  %v279 = vpop.f32.mrf.mxu0
  %v280 = vadd.f32 0.0, %v279
  %281 = vmatmul.f32.gmra.mxu0 %v100
  %v282 = vpop.f32.mrf.mxu0
  %v283 = vadd.f32 0.0, %v282
  %284 = vmatmul.f32.gmra.mxu0 %v103
  %v285 = vpop.f32.mrf.mxu0
  %v286 = vadd.f32 0.0, %v285
  %287 = vmatmul.f32.gmra.mxu0 %v106
  %v288 = vpop.f32.mrf.mxu0
  %v289 = vadd.f32 0.0, %v288
  %290 = vmatmul.f32.gmra.mxu0 %v109
  %v291 = vpop.f32.mrf.mxu0
  %v292 = vadd.f32 0.0, %v291
  %293 = vmatmul.f32.gmra.mxu0 %v112
  %v294 = vpop.f32.mrf.mxu0
  %v295 = vadd.f32 0.0, %v294
  %296 = vmatmul.f32.gmra.mxu0 %v115
  %v297 = vpop.f32.mrf.mxu0
  %v298 = vadd.f32 0.0, %v297
  %299 = vmatmul.f32.gmra.mxu0 %v118
  %v300 = vpop.f32.mrf.mxu0
  %v301 = vadd.f32 0.0, %v300
  %302 = vmatmul.f32.gmra.mxu0 %v121
  %v303 = vpop.f32.mrf.mxu0
  %v304 = vadd.f32 0.0, %v303
  %305 = vmatmul.f32.gmra.mxu0 %v124
  %v306 = vpop.f32.mrf.mxu0
  %v307 = vadd.f32 0.0, %v306
  %308 = vmatmul.f32.gmra.mxu0 %v127
  %v309 = vpop.f32.mrf.mxu0
  %v310 = vadd.f32 0.0, %v309
  %311 = vmatmul.f32.gmra.mxu0 %v130
  %v312 = vpop.f32.mrf.mxu0
  %v313 = vadd.f32 0.0, %v312
  %314 = vmatmul.f32.gmra.mxu0 %v133
  %v315 = vpop.f32.mrf.mxu0
  %v316 = vadd.f32 0.0, %v315
  %317 = vmatmul.f32.gmra.mxu0 %v136
  %v318 = vpop.f32.mrf.mxu0
  %v319 = vadd.f32 0.0, %v318
  %320 = vmatmul.f32.gmra.mxu0 %v139
  %v321 = vpop.f32.mrf.mxu0
  %v322 = vadd.f32 0.0, %v321
  %323 = vmatmul.f32.gmra.mxu0 %v142
  %v324 = vpop.f32.mrf.mxu0
  %v325 = vadd.f32 0.0, %v324
  %326 = vmatmul.f32.gmra.mxu0 %v145
  %v327 = vpop.f32.mrf.mxu0
  %v328 = vadd.f32 0.0, %v327
  %329 = vmatmul.f32.gmra.mxu0 %v148
  %v330 = vpop.f32.mrf.mxu0
  %v331 = vadd.f32 0.0, %v330
  %332 = vmatmul.f32.gmra.mxu0 %v151
  %v333 = vpop.f32.mrf.mxu0
  %v334 = vadd.f32 0.0, %v333
  %335 = vmatmul.f32.gmra.mxu0 %v154
  %v336 = vpop.f32.mrf.mxu0
  %v337 = vadd.f32 0.0, %v336
  %338 = vmatmul.f32.gmra.mxu0 %v157
  %v339 = vpop.f32.mrf.mxu0
  %v340 = vadd.f32 0.0, %v339
  %341 = vmatmul.f32.gmra.mxu0 %v160
  %v342 = vpop.f32.mrf.mxu0
  %v343 = vadd.f32 0.0, %v342
  %344 = vmatmul.f32.gmra.mxu0 %v163
  %v345 = vpop.f32.mrf.mxu0
  %v346 = vadd.f32 0.0, %v345
  %347 = vmatmul.f32.gmra.mxu0 %v166
  %v348 = vpop.f32.mrf.mxu0
  %v349 = vadd.f32 0.0, %v348
  %350 = vmatmul.f32.gmra.mxu0 %v169
  %v351 = vpop.f32.mrf.mxu0
  %v352 = vadd.f32 0.0, %v351
  %353 = vmatmul.f32.gmra.mxu0 %v172
  %v354 = vpop.f32.mrf.mxu0
  %v355 = vadd.f32 0.0, %v354
  %356 = vmatmul.f32.gmra.mxu0 %v175
  %v357 = vpop.f32.mrf.mxu0
  %v358 = vadd.f32 0.0, %v357
  %359 = vmatmul.f32.gmra.mxu0 %v178
  %v360 = vpop.f32.mrf.mxu0
  %v361 = vadd.f32 0.0, %v360
  %362 = vmatmul.f32.gmra.mxu0 %v181
  %v363 = vpop.f32.mrf.mxu0
  %v364 = vadd.f32 0.0, %v363
  %365 = vmatmul.f32.gmra.mxu0 %v184
  %v366 = vpop.f32.mrf.mxu0
  %v367 = vadd.f32 0.0, %v366
  %368 = vmatmul.f32.gmra.mxu0 %v187
  %v369 = vpop.f32.mrf.mxu0
  %v370 = vadd.f32 0.0, %v369
  %371 = vmatmul.f32.gmra.mxu0 %v190
  %v372 = vpop.f32.mrf.mxu0
  %v373 = vadd.f32 0.0, %v372
  %374 = vmatmul.f32.gmra.mxu0 %v193
  %v375 = vpop.f32.mrf.mxu0
  %v376 = vadd.f32 0.0, %v375
  %377 = vmatmul.f32.gmra.mxu0 %v196
  %v378 = vpop.f32.mrf.mxu0
  %v379 = vadd.f32 0.0, %v378
  %380 = vmatmul.f32.gmra.mxu0 %v199
  %v381 = vpop.f32.mrf.mxu0
  %v382 = vadd.f32 0.0, %v381
  %383 = vmatmul.f32.gmra.mxu0 %v202
  %v384 = vpop.f32.mrf.mxu0
  %v385 = vadd.f32 0.0, %v384
  %386 = vmatmul.f32.gmra.mxu0 %v205
  %v387 = vpop.f32.mrf.mxu0
  %v388 = vadd.f32 0.0, %v387
  %389 = vmatmul.f32.gmra.mxu0 %v208
  %v390 = vpop.f32.mrf.mxu0
  %v391 = vadd.f32 0.0, %v390
  %392 = vmatmul.f32.gmra.mxu0 %v211
  %v393 = vpop.f32.mrf.mxu0
  %v394 = vadd.f32 0.0, %v393
  %395 = vmatmul.f32.gmra.mxu0 %v214
  %v396 = vpop.f32.mrf.mxu0
  %v397 = vadd.f32 0.0, %v396
  %398 = vmatmul.f32.gmra.mxu0 %v217
  %v399 = vpop.f32.mrf.mxu0
  %v400 = vadd.f32 0.0, %v399
  %401 = vmatmul.f32.gmra.mxu0 %v220
  %v402 = vpop.f32.mrf.mxu0
  %v403 = vadd.f32 0.0, %v402
  %404 = vmatmul.f32.gmra.mxu0 %v223
  %v405 = vpop.f32.mrf.mxu0
  %v406 = vadd.f32 0.0, %v405
  %407 = vmatmul.f32.gmra.mxu0 %v226
  %v408 = vpop.f32.mrf.mxu0
  %v409 = vadd.f32 0.0, %v408
  %410 = vmatmul.f32.gmra.mxu0 %v229
  %v411 = vpop.f32.mrf.mxu0
  %v412 = vadd.f32 0.0, %v411
  %413 = vmatmul.f32.gmra.mxu0 %v232
  %v414 = vpop.f32.mrf.mxu0
  %v415 = vadd.f32 0.0, %v414
  %416 = vmatmul.f32.gmra.mxu0 %v235
  %v417 = vpop.f32.mrf.mxu0
  %v418 = vadd.f32 0.0, %v417
  %419 = vmatmul.f32.gmra.mxu0 %v238
  %v420 = vpop.f32.mrf.mxu0
  %v421 = vadd.f32 0.0, %v420
  %422 = vmatmul.f32.gmra.mxu0 %v241
  %v423 = vpop.f32.mrf.mxu0
  %v424 = vadd.f32 0.0, %v423
  %425 = vmatmul.f32.gmra.mxu0 %v244
  %v426 = vpop.f32.mrf.mxu0
  %v427 = vadd.f32 0.0, %v426
  %428 = vdwg.mxu0
  %vm429 = vcmask 89088
  %430 = vst.msk [vmem:[%s4] sm:$0xff] %vm429, %v268
  %431 = vst.msk [vmem:[%s4 + $0x8] sm:$0xff] %vm429, %v271
  %432 = vst.msk [vmem:[%s4 + $0x10] sm:$0xff] %vm429, %v274
  %433 = vst.msk [vmem:[%s4 + $0x18] sm:$0xff] %vm429, %v277
  %434 = vst.msk [vmem:[%s4 + $0x20] sm:$0xff] %vm429, %v280
  %435 = vst.msk [vmem:[%s4 + $0x28] sm:$0xff] %vm429, %v283
  %436 = vst.msk [vmem:[%s4 + $0x30] sm:$0xff] %vm429, %v286
  %437 = vst.msk [vmem:[%s4 + $0x38] sm:$0xff] %vm429, %v289
  %438 = vst.msk [vmem:[%s4 + $0x40] sm:$0xff] %vm429, %v292
  %439 = vst.msk [vmem:[%s4 + $0x48] sm:$0xff] %vm429, %v295
  %440 = vst.msk [vmem:[%s4 + $0x50] sm:$0xff] %vm429, %v298
  %441 = vst.msk [vmem:[%s4 + $0x58] sm:$0xff] %vm429, %v301
  %442 = vst.msk [vmem:[%s4 + $0x60] sm:$0xff] %vm429, %v304
  %443 = vst.msk [vmem:[%s4 + $0x68] sm:$0xff] %vm429, %v307
  %444 = vst.msk [vmem:[%s4 + $0x70] sm:$0xff] %vm429, %v310
  %445 = vst.msk [vmem:[%s4 + $0x78] sm:$0xff] %vm429, %v313
  %446 = vst.msk [vmem:[%s4 + $0x80] sm:$0xff] %vm429, %v316
  %447 = vst.msk [vmem:[%s4 + $0x88] sm:$0xff] %vm429, %v319
  %448 = vst.msk [vmem:[%s4 + $0x90] sm:$0xff] %vm429, %v322
  %449 = vst.msk [vmem:[%s4 + $0x98] sm:$0xff] %vm429, %v325
  %450 = vst.msk [vmem:[%s4 + $0xa0] sm:$0xff] %vm429, %v328
  %451 = vst.msk [vmem:[%s4 + $0xa8] sm:$0xff] %vm429, %v331
  %452 = vst.msk [vmem:[%s4 + $0xb0] sm:$0xff] %vm429, %v334
  %453 = vst.msk [vmem:[%s4 + $0xb8] sm:$0xff] %vm429, %v337
  %454 = vst.msk [vmem:[%s4 + $0xc0] sm:$0xff] %vm429, %v340
  %455 = vst.msk [vmem:[%s4 + $0xc8] sm:$0xff] %vm429, %v343
  %456 = vst.msk [vmem:[%s4 + $0xd0] sm:$0xff] %vm429, %v346
  %457 = vst.msk [vmem:[%s4 + $0xd8] sm:$0xff] %vm429, %v349
  %458 = vst.msk [vmem:[%s4 + $0xe0] sm:$0xff] %vm429, %v352
  %459 = vst.msk [vmem:[%s4 + $0xe8] sm:$0xff] %vm429, %v355
  %460 = vst.msk [vmem:[%s4 + $0xf0] sm:$0xff] %vm429, %v358
  %461 = vst.msk [vmem:[%s4 + $0xf8] sm:$0xff] %vm429, %v361
  %462 = vst.msk [vmem:[%s4 + $0x100] sm:$0xff] %vm429, %v364
  %463 = vst.msk [vmem:[%s4 + $0x108] sm:$0xff] %vm429, %v367
  %464 = vst.msk [vmem:[%s4 + $0x110] sm:$0xff] %vm429, %v370
  %465 = vst.msk [vmem:[%s4 + $0x118] sm:$0xff] %vm429, %v373
  %466 = vst.msk [vmem:[%s4 + $0x120] sm:$0xff] %vm429, %v376
  %467 = vst.msk [vmem:[%s4 + $0x128] sm:$0xff] %vm429, %v379
  %468 = vst.msk [vmem:[%s4 + $0x130] sm:$0xff] %vm429, %v382
  %469 = vst.msk [vmem:[%s4 + $0x138] sm:$0xff] %vm429, %v385
  %470 = vst.msk [vmem:[%s4 + $0x140] sm:$0xff] %vm429, %v388
  %471 = vst.msk [vmem:[%s4 + $0x148] sm:$0xff] %vm429, %v391
  %472 = vst.msk [vmem:[%s4 + $0x150] sm:$0xff] %vm429, %v394
  %473 = vst.msk [vmem:[%s4 + $0x158] sm:$0xff] %vm429, %v397
  %474 = vst.msk [vmem:[%s4 + $0x160] sm:$0xff] %vm429, %v400
  %475 = vst.msk [vmem:[%s4 + $0x168] sm:$0xff] %vm429, %v403
  %476 = vst.msk [vmem:[%s4 + $0x170] sm:$0xff] %vm429, %v406
  %477 = vst.msk [vmem:[%s4 + $0x178] sm:$0xff] %vm429, %v409
  %478 = vst.msk [vmem:[%s4 + $0x180] sm:$0xff] %vm429, %v412
  %479 = vst.msk [vmem:[%s4 + $0x188] sm:$0xff] %vm429, %v415
  %480 = vst.msk [vmem:[%s4 + $0x190] sm:$0xff] %vm429, %v418
  %481 = vst.msk [vmem:[%s4 + $0x198] sm:$0xff] %vm429, %v421
  %482 = vst.msk [vmem:[%s4 + $0x1a0] sm:$0xff] %vm429, %v424
  %483 = vst.msk [vmem:[%s4 + $0x1a8] sm:$0xff] %vm429, %v427
  %v484 = vld [vmem:[%s1] sm:$0xff]
  %v485 = vld [vmem:[%s1 + $0x8] sm:$0xff]
  %v486 = vld [vmem:[%s1 + $0x10] sm:$0xff]
  %v487 = vld [vmem:[%s1 + $0x18] sm:$0xff]
  %v488 = vld [vmem:[%s1 + $0x20] sm:$0xff]
  %v489 = vld [vmem:[%s1 + $0x28] sm:$0xff]
  %v490 = vld [vmem:[%s1 + $0x30] sm:$0xff]
  %v491 = vld [vmem:[%s1 + $0x38] sm:$0xff]
  %v492 = vld [vmem:[%s1 + $0x40] sm:$0xff]
  %v493 = vld [vmem:[%s1 + $0x48] sm:$0xff]
  %v494 = vld [vmem:[%s1 + $0x50] sm:$0xff]
  %v495 = vld [vmem:[%s1 + $0x58] sm:$0xff]
  %v496 = vld [vmem:[%s3] sm:$0xff]
  %v497 = vld [vmem:[%s3 + $0x8] sm:$0xff]
  %v498 = vld [vmem:[%s3 + $0x10] sm:$0xff]
  %v499 = vld [vmem:[%s3 + $0x18] sm:$0xff]
  %v500 = vld [vmem:[%s3 + $0x20] sm:$0xff]
  %v501 = vld [vmem:[%s3 + $0x28] sm:$0xff]
  %v502 = vld [vmem:[%s3 + $0x30] sm:$0xff]
  %v503 = vld [vmem:[%s3 + $0x38] sm:$0xff]
  %v504 = vld [vmem:[%s3 + $0x40] sm:$0xff]
  %v505 = vld [vmem:[%s3 + $0x48] sm:$0x3]
  %v507 = vsel %vm83, %v484, 0
  %v510 = vsel %vm83, %v485, 0
  %v513 = vsel %vm83, %v486, 0
  %v516 = vsel %vm83, %v487, 0
  %v519 = vsel %vm83, %v488, 0
  %v522 = vsel %vm83, %v489, 0
  %v525 = vsel %vm83, %v490, 0
  %v528 = vsel %vm83, %v491, 0
  %v531 = vsel %vm83, %v492, 0
  %v534 = vsel %vm83, %v493, 0
  %v537 = vsel %vm83, %v494, 0
  %v540 = vsel %vm83, %v495, 0
  %v543 = vsel %vm246, %v505, 0
  %545 = vmatpush.msra.mxu0 0.0
  %546 = vmatpush.msra.mxu0 0.0
  %547 = vmatpush.msra.mxu0 0.0
  %548 = vmatpush.msra.mxu0 0.0
  %549 = vmatpush.msra.mxu0 0.0
  %550 = vmatpush.msra.mxu0 0.0
  %551 = vmatpush.msra.mxu0 %v543
  %552 = vmatpush.msra.mxu0 %v504
  %553 = vmatpush.msra.mxu0 %v503
  %554 = vmatpush.msra.mxu0 %v502
  %555 = vmatpush.msra.mxu0 %v501
  %556 = vmatpush.msra.mxu0 %v500
  %557 = vmatpush.msra.mxu0 %v499
  %558 = vmatpush.msra.mxu0 %v498
  %559 = vmatpush.msra.mxu0 %v497
  %560 = vmatpush.msra.mxu0 %v496
  %561 = vmatmul.f32.gmra.mxu0 %v507
  %v562 = vpop.f32.mrf.mxu0
  %v563 = vadd.f32 0.0, %v562
  %564 = vmatmul.f32.gmra.mxu0 %v510
  %v565 = vpop.f32.mrf.mxu0
  %v566 = vadd.f32 0.0, %v565
  %567 = vmatmul.f32.gmra.mxu0 %v513
  %v568 = vpop.f32.mrf.mxu0
  %v569 = vadd.f32 0.0, %v568
  %570 = vmatmul.f32.gmra.mxu0 %v516
  %v571 = vpop.f32.mrf.mxu0
  %v572 = vadd.f32 0.0, %v571
  %573 = vmatmul.f32.gmra.mxu0 %v519
  %v574 = vpop.f32.mrf.mxu0
  %v575 = vadd.f32 0.0, %v574
  %576 = vmatmul.f32.gmra.mxu0 %v522
  %v577 = vpop.f32.mrf.mxu0
  %v578 = vadd.f32 0.0, %v577
  %579 = vmatmul.f32.gmra.mxu0 %v525
  %v580 = vpop.f32.mrf.mxu0
  %v581 = vadd.f32 0.0, %v580
  %582 = vmatmul.f32.gmra.mxu0 %v528
  %v583 = vpop.f32.mrf.mxu0
  %v584 = vadd.f32 0.0, %v583
  %585 = vmatmul.f32.gmra.mxu0 %v531
  %v586 = vpop.f32.mrf.mxu0
  %v587 = vadd.f32 0.0, %v586
  %588 = vmatmul.f32.gmra.mxu0 %v534
  %v589 = vpop.f32.mrf.mxu0
  %v590 = vadd.f32 0.0, %v589
  %591 = vmatmul.f32.gmra.mxu0 %v537
  %v592 = vpop.f32.mrf.mxu0
  %v593 = vadd.f32 0.0, %v592
  %594 = vmatmul.f32.gmra.mxu0 %v540
  %v595 = vpop.f32.mrf.mxu0
  %v596 = vadd.f32 0.0, %v595
  %597 = vdwg.mxu0
  %598 = vst.msk [vmem:[%s5] sm:$0xff] %vm429, %v563
  %599 = vst.msk [vmem:[%s5 + $0x8] sm:$0xff] %vm429, %v566
  %600 = vst.msk [vmem:[%s5 + $0x10] sm:$0xff] %vm429, %v569
  %601 = vst.msk [vmem:[%s5 + $0x18] sm:$0xff] %vm429, %v572
  %602 = vst.msk [vmem:[%s5 + $0x20] sm:$0xff] %vm429, %v575
  %603 = vst.msk [vmem:[%s5 + $0x28] sm:$0xff] %vm429, %v578
  %604 = vst.msk [vmem:[%s5 + $0x30] sm:$0xff] %vm429, %v581
  %605 = vst.msk [vmem:[%s5 + $0x38] sm:$0xff] %vm429, %v584
  %606 = vst.msk [vmem:[%s5 + $0x40] sm:$0xff] %vm429, %v587
  %607 = vst.msk [vmem:[%s5 + $0x48] sm:$0xff] %vm429, %v590
  %608 = vst.msk [vmem:[%s5 + $0x50] sm:$0xff] %vm429, %v593
  %609 = vst.msk [vmem:[%s5 + $0x58] sm:$0xff] %vm429, %v596
  // Predicated region
  $region18: #{protonet_forward.2} parent=0 // pred_check
    _
  $region19: #{protonet_forward.2} parent=0 // pred_check_branch
    %611 = sbr.rel (0) target = $region21
  $region20: #{protonet_forward.2} parent=0 // pred_region
    _
  $region21: #{protonet_forward.2} parent=0 // pred_fallthru
    _
  // Predicated region
  $region22: #{protonet_forward.2} parent=0 // pred_check
    _
  $region23: #{protonet_forward.2} parent=0 // pred_check_branch
    %613 = sbr.rel (0) target = $region25
  $region24: #{protonet_forward.2} parent=0 // pred_region
    _
  $region25: #{protonet_forward.2} parent=0 // pred_fallthru
    _
  // Predicated region
  $region26: #{protonet_forward.2} parent=0 // pred_check
    _
  $region27: #{protonet_forward.2} parent=0 // pred_check_branch
    %615 = sbr.rel (0) target = $region29
  $region28: #{protonet_forward.2} parent=0 // pred_region
    _
  $region29: #{protonet_forward.2} parent=0 // pred_fallthru
    _
  // Predicated region
  $region30: #{protonet_forward.2} parent=0 // pred_check
    _
  $region31: #{protonet_forward.2} parent=0 // pred_check_branch
    %617 = sbr.rel (0) target = $region33
  $region32: #{protonet_forward.2} parent=0 // pred_region
    _
  $region33: #{protonet_forward.2} parent=0 // pred_fallthru
    _

// kernel: protonet_forward.3
$region0: #{protonet_forward.3}
  #allocation0 [shape = 'u32[]', space=smem, size = 0x4, offset = 0x4, fixed_abs, tag = 'smem constant byte address 0x4 - core index']
  #allocation1 [shape = 'u32[72,128]{1,0:T(1,128)}', space=vmem, size = 0x9000, scoped, tag = 'internal scratch']
  %s0 = inlined_call_operand.vmem [shape: f32[6,30], index: 0, kind: input, shape index: {}]
  %s1 = inlined_call_operand.vmem [shape: f32[6,792], index: 1, kind: input, shape index: {}]
  %s2 = inlined_call_operand.vmem [shape: f32[6,176], index: 2, kind: input, shape index: {}]
  %s3 = inlined_call_operand.vmem [shape: f32[30,8], index: 3, kind: input, shape index: {}]
  %s4 = inlined_call_operand.vmem [shape: f32[792,8], index: 4, kind: input, shape index: {}]
  %s5 = inlined_call_operand.vmem [shape: f32[176,8], index: 5, kind: input, shape index: {}]
  %s6 = inlined_call_operand.vmem [shape: f32[1,8], index: 6, kind: input, shape index: {}]
  %s7 = inlined_call_operand.vmem [shape: f32[8,2], index: 7, kind: input, shape index: {}]
  %s8 = inlined_call_operand.vmem [shape: f32[6,2], index: 8, kind: output, shape index: {0}]
  %s9 = inlined_call_operand.hbm [shape: f32[6,8], index: 9, kind: output, shape index: {1}]
  %10 = xla_tuple %s8, %s9
  %s11 = sld [smem:[#allocation0]]
  $region50: #{protonet_forward.3} parent=0
    _
  %s13 = ssub.s32 1, %s11
  %s14 = scalar_select 0, %s13, %s11
  $region1: #{protonet_forward.3} parent=0
    #allocation2 [shape = 'u8[4096]{0}', space=vmem, size = 0x1000, scoped, tag = 'output window, operand 1, single buffered']
    #allocation3 [shape = 's32[1]{0}', space=sflag, size = 0x4, scoped, tag = 'scoped memory for protonet_forward.3']
    %15 = vsyncpa [#allocation3], 0
    // Predicated region
    $region2: #{protonet_forward.3} parent=1 // pred_check
      _
    $region3: #{protonet_forward.3} parent=1 // pred_check_branch
      %17 = sbr.rel (0) target = $region5
    $region4: #{protonet_forward.3} parent=1 // pred_region
      _
    $region5: #{protonet_forward.3} parent=1 // pred_fallthru
      _
    // Predicated region
    $region6: #{protonet_forward.3} parent=1 // pred_check
      _
    $region7: #{protonet_forward.3} parent=1 // pred_check_branch
      %19 = sbr.rel (0) target = $region9
    $region8: #{protonet_forward.3} parent=1 // pred_region
      _
    $region9: #{protonet_forward.3} parent=1 // pred_fallthru
      _
    // Predicated region
    $region10: #{protonet_forward.3} parent=1 // pred_check
      _
    $region11: #{protonet_forward.3} parent=1 // pred_check_branch
      %21 = sbr.rel (0) target = $region13
    $region12: #{protonet_forward.3} parent=1 // pred_region
      _
    $region13: #{protonet_forward.3} parent=1 // pred_fallthru
      _
    // Predicated region
    $region14: #{protonet_forward.3} parent=1 // pred_check
      _
    $region15: #{protonet_forward.3} parent=1 // pred_check_branch
      %23 = sbr.rel (0) target = $region17
    $region16: #{protonet_forward.3} parent=1 // pred_region
      _
    $region17: #{protonet_forward.3} parent=1 // pred_fallthru
      _
    // Predicated region
    $region18: #{protonet_forward.3} parent=1 // pred_check
      _
    $region19: #{protonet_forward.3} parent=1 // pred_check_branch
      %25 = sbr.rel (0) target = $region21
    $region20: #{protonet_forward.3} parent=1 // pred_region
      _
    $region21: #{protonet_forward.3} parent=1 // pred_fallthru
      _
    // Predicated region
    $region22: #{protonet_forward.3} parent=1 // pred_check
      _
    $region23: #{protonet_forward.3} parent=1 // pred_check_branch
      %27 = sbr.rel (0) target = $region25
    $region24: #{protonet_forward.3} parent=1 // pred_region
      _
    $region25: #{protonet_forward.3} parent=1 // pred_fallthru
      _
    // Predicated region
    $region26: #{protonet_forward.3} parent=1 // pred_check
      _
    $region27: #{protonet_forward.3} parent=1 // pred_check_branch
      %29 = sbr.rel (0) target = $region29
    $region28: #{protonet_forward.3} parent=1 // pred_region
      _
    $region29: #{protonet_forward.3} parent=1 // pred_fallthru
      _
    // Predicated region
    $region30: #{protonet_forward.3} parent=1 // pred_check
      _
    $region31: #{protonet_forward.3} parent=1 // pred_check_branch
      %31 = sbr.rel (0) target = $region33
    $region32: #{protonet_forward.3} parent=1 // pred_region
      _
    $region33: #{protonet_forward.3} parent=1 // pred_fallthru
      _
    %v32 = vld [vmem:[%s0] sm:$0x3f]
    %v33 = vld [vmem:[%s1] sm:$0x3f]
    %v34 = vld [vmem:[%s1 + $0x8] sm:$0x3f]
    %v35 = vld [vmem:[%s1 + $0x10] sm:$0x3f]
    %v36 = vld [vmem:[%s1 + $0x18] sm:$0x3f]
    %v37 = vld [vmem:[%s1 + $0x20] sm:$0x3f]
    %v38 = vld [vmem:[%s1 + $0x28] sm:$0x3f]
    %v39 = vld [vmem:[%s1 + $0x30] sm:$0x3f]
    %v40 = vld [vmem:[%s2] sm:$0x3f]
    %v41 = vld [vmem:[%s2 + $0x8] sm:$0x3f]
    %v42 = vld [vmem:[%s3] sm:$0xff]
    %v43 = vld [vmem:[%s3 + $0x8] sm:$0xff]
    %v44 = vld [vmem:[%s3 + $0x10] sm:$0xff]
    %v45 = vld [vmem:[%s3 + $0x18] sm:$0x3f]
    %v46 = vld [vmem:[%s4] sm:$0xff]
    %v47 = vld [vmem:[%s4 + $0x8] sm:$0xff]
    %v48 = vld [vmem:[%s4 + $0x10] sm:$0xff]
    %v49 = vld [vmem:[%s4 + $0x18] sm:$0xff]
    %v50 = vld [vmem:[%s4 + $0x20] sm:$0xff]
    %v51 = vld [vmem:[%s4 + $0x28] sm:$0xff]
    %v52 = vld [vmem:[%s4 + $0x30] sm:$0xff]
    %v53 = vld [vmem:[%s4 + $0x38] sm:$0xff]
    %v54 = vld [vmem:[%s4 + $0x40] sm:$0xff]
    %v55 = vld [vmem:[%s4 + $0x48] sm:$0xff]
    %v56 = vld [vmem:[%s4 + $0x50] sm:$0xff]
    %v57 = vld [vmem:[%s4 + $0x58] sm:$0xff]
    %v58 = vld [vmem:[%s4 + $0x60] sm:$0xff]
    %v59 = vld [vmem:[%s4 + $0x68] sm:$0xff]
    %v60 = vld [vmem:[%s4 + $0x70] sm:$0xff]
    %v61 = vld [vmem:[%s4 + $0x78] sm:$0xff]
    %v62 = vld [vmem:[%s4 + $0x80] sm:$0xff]
    %v63 = vld [vmem:[%s4 + $0x88] sm:$0xff]
    %v64 = vld [vmem:[%s4 + $0x90] sm:$0xff]
    %v65 = vld [vmem:[%s4 + $0x98] sm:$0xff]
    %v66 = vld [vmem:[%s4 + $0xa0] sm:$0xff]
    %v67 = vld [vmem:[%s4 + $0xa8] sm:$0xff]
    %v68 = vld [vmem:[%s4 + $0xb0] sm:$0xff]
    %v69 = vld [vmem:[%s4 + $0xb8] sm:$0xff]
    %v70 = vld [vmem:[%s4 + $0xc0] sm:$0xff]
    %v71 = vld [vmem:[%s4 + $0xc8] sm:$0xff]
    %v72 = vld [vmem:[%s4 + $0xd0] sm:$0xff]
    %v73 = vld [vmem:[%s4 + $0xd8] sm:$0xff]
    %v74 = vld [vmem:[%s4 + $0xe0] sm:$0xff]
    %v75 = vld [vmem:[%s4 + $0xe8] sm:$0xff]
    %v76 = vld [vmem:[%s4 + $0xf0] sm:$0xff]
    %v77 = vld [vmem:[%s4 + $0xf8] sm:$0xff]
    %v78 = vld [vmem:[%s4 + $0x100] sm:$0xff]
    %v79 = vld [vmem:[%s4 + $0x108] sm:$0xff]
    %v80 = vld [vmem:[%s4 + $0x110] sm:$0xff]
    %v81 = vld [vmem:[%s4 + $0x118] sm:$0xff]
    %v82 = vld [vmem:[%s4 + $0x120] sm:$0xff]
    %v83 = vld [vmem:[%s4 + $0x128] sm:$0xff]
    %v84 = vld [vmem:[%s4 + $0x130] sm:$0xff]
    %v85 = vld [vmem:[%s4 + $0x138] sm:$0xff]
    %v86 = vld [vmem:[%s4 + $0x140] sm:$0xff]
    %v87 = vld [vmem:[%s4 + $0x148] sm:$0xff]
    %v88 = vld [vmem:[%s4 + $0x150] sm:$0xff]
    %v89 = vld [vmem:[%s4 + $0x158] sm:$0xff]
    %v90 = vld [vmem:[%s4 + $0x160] sm:$0xff]
    %v91 = vld [vmem:[%s4 + $0x168] sm:$0xff]
    %v92 = vld [vmem:[%s4 + $0x170] sm:$0xff]
    %v93 = vld [vmem:[%s4 + $0x178] sm:$0xff]
    %v94 = vld [vmem:[%s4 + $0x180] sm:$0xff]
    %v95 = vld [vmem:[%s4 + $0x188] sm:$0xff]
    %v96 = vld [vmem:[%s4 + $0x190] sm:$0xff]
    %v97 = vld [vmem:[%s4 + $0x198] sm:$0xff]
    %v98 = vld [vmem:[%s4 + $0x1a0] sm:$0xff]
    %v99 = vld [vmem:[%s4 + $0x1a8] sm:$0xff]
    %v100 = vld [vmem:[%s4 + $0x1b0] sm:$0xff]
    %v101 = vld [vmem:[%s4 + $0x1b8] sm:$0xff]
    %v102 = vld [vmem:[%s4 + $0x1c0] sm:$0xff]
    %v103 = vld [vmem:[%s4 + $0x1c8] sm:$0xff]
    %v104 = vld [vmem:[%s4 + $0x1d0] sm:$0xff]
    %v105 = vld [vmem:[%s4 + $0x1d8] sm:$0xff]
    %v106 = vld [vmem:[%s4 + $0x1e0] sm:$0xff]
    %v107 = vld [vmem:[%s4 + $0x1e8] sm:$0xff]
    %v108 = vld [vmem:[%s4 + $0x1f0] sm:$0xff]
    %v109 = vld [vmem:[%s4 + $0x1f8] sm:$0xff]
    %v110 = vld [vmem:[%s4 + $0x200] sm:$0xff]
    %v111 = vld [vmem:[%s4 + $0x208] sm:$0xff]
    %v112 = vld [vmem:[%s4 + $0x210] sm:$0xff]
    %v113 = vld [vmem:[%s4 + $0x218] sm:$0xff]
    %v114 = vld [vmem:[%s4 + $0x220] sm:$0xff]
    %v115 = vld [vmem:[%s4 + $0x228] sm:$0xff]
    %v116 = vld [vmem:[%s4 + $0x230] sm:$0xff]
    %v117 = vld [vmem:[%s4 + $0x238] sm:$0xff]
    %v118 = vld [vmem:[%s4 + $0x240] sm:$0xff]
    %v119 = vld [vmem:[%s4 + $0x248] sm:$0xff]
    %v120 = vld [vmem:[%s4 + $0x250] sm:$0xff]
    %v121 = vld [vmem:[%s4 + $0x258] sm:$0xff]
    %v122 = vld [vmem:[%s4 + $0x260] sm:$0xff]
    %v123 = vld [vmem:[%s4 + $0x268] sm:$0xff]
    %v124 = vld [vmem:[%s4 + $0x270] sm:$0xff]
    %v125 = vld [vmem:[%s4 + $0x278] sm:$0xff]
    %v126 = vld [vmem:[%s4 + $0x280] sm:$0xff]
    %v127 = vld [vmem:[%s4 + $0x288] sm:$0xff]
    %v128 = vld [vmem:[%s4 + $0x290] sm:$0xff]
    %v129 = vld [vmem:[%s4 + $0x298] sm:$0xff]
    %v130 = vld [vmem:[%s4 + $0x2a0] sm:$0xff]
    %v131 = vld [vmem:[%s4 + $0x2a8] sm:$0xff]
    %v132 = vld [vmem:[%s4 + $0x2b0] sm:$0xff]
    %v133 = vld [vmem:[%s4 + $0x2b8] sm:$0xff]
    %v134 = vld [vmem:[%s4 + $0x2c0] sm:$0xff]
    %v135 = vld [vmem:[%s4 + $0x2c8] sm:$0xff]
    %v136 = vld [vmem:[%s4 + $0x2d0] sm:$0xff]
    %v137 = vld [vmem:[%s4 + $0x2d8] sm:$0xff]
    %v138 = vld [vmem:[%s4 + $0x2e0] sm:$0xff]
    %v139 = vld [vmem:[%s4 + $0x2e8] sm:$0xff]
    %v140 = vld [vmem:[%s4 + $0x2f0] sm:$0xff]
    %v141 = vld [vmem:[%s4 + $0x2f8] sm:$0xff]
    %v142 = vld [vmem:[%s4 + $0x300] sm:$0xff]
    %v143 = vld [vmem:[%s4 + $0x308] sm:$0xff]
    %v144 = vld [vmem:[%s4 + $0x310] sm:$0xff]
    %vm145 = vcmask 195584
    %v147 = vsel %vm145, %v39, 0
    %149 = vmatpush.msra.mxu0 %v61
    %150 = vmatpush.msra.mxu0 %v60
    %151 = vmatpush.msra.mxu0 %v59
    %152 = vmatpush.msra.mxu0 %v58
    %153 = vmatpush.msra.mxu0 %v57
    %154 = vmatpush.msra.mxu0 %v56
    %155 = vmatpush.msra.mxu0 %v55
    %156 = vmatpush.msra.mxu0 %v54
    %157 = vmatpush.msra.mxu0 %v53
    %158 = vmatpush.msra.mxu0 %v52
    %159 = vmatpush.msra.mxu0 %v51
    %160 = vmatpush.msra.mxu0 %v50
    %161 = vmatpush.msra.mxu0 %v49
    %162 = vmatpush.msra.mxu0 %v48
    %163 = vmatpush.msra.mxu0 %v47
    %164 = vmatpush.msra.mxu0 %v46
    %165 = vmatmul.f32.gmra.mxu0 %v33
    %v166 = vpop.f32.mrf.mxu0
    %v167 = vadd.f32 0.0, %v166
    %168 = vdwg.mxu0
    %169 = vmatpush.msra.mxu0 %v77
    %170 = vmatpush.msra.mxu0 %v76
    %171 = vmatpush.msra.mxu0 %v75
    %172 = vmatpush.msra.mxu0 %v74
    %173 = vmatpush.msra.mxu0 %v73
    %174 = vmatpush.msra.mxu0 %v72
    %175 = vmatpush.msra.mxu0 %v71
    %176 = vmatpush.msra.mxu0 %v70
    %177 = vmatpush.msra.mxu0 %v69
    %178 = vmatpush.msra.mxu0 %v68
    %179 = vmatpush.msra.mxu0 %v67
    %180 = vmatpush.msra.mxu0 %v66
    %181 = vmatpush.msra.mxu0 %v65
    %182 = vmatpush.msra.mxu0 %v64
    %183 = vmatpush.msra.mxu0 %v63
    %184 = vmatpush.msra.mxu0 %v62
    %185 = vmatmul.f32.gmra.mxu0 %v34
    %v186 = vpop.f32.mrf.mxu0
    %v187 = vadd.f32 %v167, %v186
    %188 = vdwg.mxu0
    %189 = vmatpush.msra.mxu0 %v93
    %190 = vmatpush.msra.mxu0 %v92
    %191 = vmatpush.msra.mxu0 %v91
    %192 = vmatpush.msra.mxu0 %v90
    %193 = vmatpush.msra.mxu0 %v89
    %194 = vmatpush.msra.mxu0 %v88
    %195 = vmatpush.msra.mxu0 %v87
    %196 = vmatpush.msra.mxu0 %v86
    %197 = vmatpush.msra.mxu0 %v85
    %198 = vmatpush.msra.mxu0 %v84
    %199 = vmatpush.msra.mxu0 %v83
    %200 = vmatpush.msra.mxu0 %v82
    %201 = vmatpush.msra.mxu0 %v81
    %202 = vmatpush.msra.mxu0 %v80
    %203 = vmatpush.msra.mxu0 %v79
    %204 = vmatpush.msra.mxu0 %v78
    %205 = vmatmul.f32.gmra.mxu0 %v35
    %v206 = vpop.f32.mrf.mxu0
    %v207 = vadd.f32 %v187, %v206
    %208 = vdwg.mxu0
    %209 = vmatpush.msra.mxu0 %v109
    %210 = vmatpush.msra.mxu0 %v108
    %211 = vmatpush.msra.mxu0 %v107
    %212 = vmatpush.msra.mxu0 %v106
    %213 = vmatpush.msra.mxu0 %v105
    %214 = vmatpush.msra.mxu0 %v104
    %215 = vmatpush.msra.mxu0 %v103
    %216 = vmatpush.msra.mxu0 %v102
    %217 = vmatpush.msra.mxu0 %v101
    %218 = vmatpush.msra.mxu0 %v100
    %219 = vmatpush.msra.mxu0 %v99
    %220 = vmatpush.msra.mxu0 %v98
    %221 = vmatpush.msra.mxu0 %v97
    %222 = vmatpush.msra.mxu0 %v96
    %223 = vmatpush.msra.mxu0 %v95
    %224 = vmatpush.msra.mxu0 %v94
    %225 = vmatmul.f32.gmra.mxu0 %v36
    %v226 = vpop.f32.mrf.mxu0
    %v227 = vadd.f32 %v207, %v226
    %228 = vdwg.mxu0
    %229 = vmatpush.msra.mxu0 %v125
    %230 = vmatpush.msra.mxu0 %v124
    %231 = vmatpush.msra.mxu0 %v123
    %232 = vmatpush.msra.mxu0 %v122
    %233 = vmatpush.msra.mxu0 %v121
    %234 = vmatpush.msra.mxu0 %v120
    %235 = vmatpush.msra.mxu0 %v119
    %236 = vmatpush.msra.mxu0 %v118
    %237 = vmatpush.msra.mxu0 %v117
    %238 = vmatpush.msra.mxu0 %v116
    %239 = vmatpush.msra.mxu0 %v115
    %240 = vmatpush.msra.mxu0 %v114
    %241 = vmatpush.msra.mxu0 %v113
    %242 = vmatpush.msra.mxu0 %v112
    %243 = vmatpush.msra.mxu0 %v111
    %244 = vmatpush.msra.mxu0 %v110
    %245 = vmatmul.f32.gmra.mxu0 %v37
    %v246 = vpop.f32.mrf.mxu0
    %v247 = vadd.f32 %v227, %v246
    %248 = vdwg.mxu0
    %249 = vmatpush.msra.mxu0 %v141
    %250 = vmatpush.msra.mxu0 %v140
    %251 = vmatpush.msra.mxu0 %v139
    %252 = vmatpush.msra.mxu0 %v138
    %253 = vmatpush.msra.mxu0 %v137
    %254 = vmatpush.msra.mxu0 %v136
    %255 = vmatpush.msra.mxu0 %v135
    %256 = vmatpush.msra.mxu0 %v134
    %257 = vmatpush.msra.mxu0 %v133
    %258 = vmatpush.msra.mxu0 %v132
    %259 = vmatpush.msra.mxu0 %v131
    %260 = vmatpush.msra.mxu0 %v130
    %261 = vmatpush.msra.mxu0 %v129
    %262 = vmatpush.msra.mxu0 %v128
    %263 = vmatpush.msra.mxu0 %v127
    %264 = vmatpush.msra.mxu0 %v126
    %265 = vmatmul.f32.gmra.mxu0 %v38
    %v266 = vpop.f32.mrf.mxu0
    %v267 = vadd.f32 %v247, %v266
    %268 = vdwg.mxu0
    %269 = vmatpush.msra.mxu0 0.0
    %270 = vmatpush.msra.mxu0 0.0
    %271 = vmatpush.msra.mxu0 0.0
    %272 = vmatpush.msra.mxu0 0.0
    %273 = vmatpush.msra.mxu0 0.0
    %274 = vmatpush.msra.mxu0 0.0
    %275 = vmatpush.msra.mxu0 0.0
    %276 = vmatpush.msra.mxu0 0.0
    %277 = vmatpush.msra.mxu0 0.0
    %278 = vmatpush.msra.mxu0 0.0
    %279 = vmatpush.msra.mxu0 0.0
    %280 = vmatpush.msra.mxu0 0.0
    %281 = vmatpush.msra.mxu0 0.0
    %282 = vmatpush.msra.mxu0 %v144
    %283 = vmatpush.msra.mxu0 %v143
    %284 = vmatpush.msra.mxu0 %v142
    %285 = vmatmul.f32.gmra.mxu0 %v147
    %v286 = vpop.f32.mrf.mxu0
    %v287 = vadd.f32 %v267, %v286
    %288 = vdwg.mxu0
    %vm289 = vcmask 244736
    %v291 = vsel %vm289, %v32, 0
    %vm293 = vcmask 1045504
    %v295 = vsel %vm293, %v45, 0
    %297 = vmatpush.msra.mxu0 0.0
    %298 = vmatpush.msra.mxu0 0.0
    %299 = vmatpush.msra.mxu0 0.0
    %300 = vmatpush.msra.mxu0 0.0
    %301 = vmatpush.msra.mxu0 0.0
    %302 = vmatpush.msra.mxu0 0.0
    %303 = vmatpush.msra.mxu0 0.0
    %304 = vmatpush.msra.mxu0 0.0
    %305 = vmatpush.msra.mxu0 0.0
    %306 = vmatpush.msra.mxu0 0.0
    %307 = vmatpush.msra.mxu0 0.0
    %308 = vmatpush.msra.mxu0 0.0
    %309 = vmatpush.msra.mxu0 %v295
    %310 = vmatpush.msra.mxu0 %v44
    %311 = vmatpush.msra.mxu0 %v43
    %312 = vmatpush.msra.mxu0 %v42
    %313 = vmatmul.f32.gmra.mxu0 %v291
    %v314 = vpop.f32.mrf.mxu0
    %v315 = vadd.f32 %v287, %v314
    %316 = vdwg.mxu0
    %v317 = vld [vmem:[%s5] sm:$0xff]
    %v318 = vld [vmem:[%s5 + $0x8] sm:$0xff]
    %v319 = vld [vmem:[%s5 + $0x10] sm:$0xff]
    %v320 = vld [vmem:[%s5 + $0x18] sm:$0xff]
    %v321 = vld [vmem:[%s5 + $0x20] sm:$0xff]
    %v322 = vld [vmem:[%s5 + $0x28] sm:$0xff]
    %v323 = vld [vmem:[%s5 + $0x30] sm:$0xff]
    %v324 = vld [vmem:[%s5 + $0x38] sm:$0xff]
    %v325 = vld [vmem:[%s5 + $0x40] sm:$0xff]
    %v326 = vld [vmem:[%s5 + $0x48] sm:$0xff]
    %v327 = vld [vmem:[%s5 + $0x50] sm:$0xff]
    %v328 = vld [vmem:[%s5 + $0x58] sm:$0xff]
    %v329 = vld [vmem:[%s5 + $0x60] sm:$0xff]
    %v330 = vld [vmem:[%s5 + $0x68] sm:$0xff]
    %v331 = vld [vmem:[%s5 + $0x70] sm:$0xff]
    %v332 = vld [vmem:[%s5 + $0x78] sm:$0xff]
    %v333 = vld [vmem:[%s5 + $0x80] sm:$0xff]
    %v334 = vld [vmem:[%s5 + $0x88] sm:$0xff]
    %v335 = vld [vmem:[%s5 + $0x90] sm:$0xff]
    %v336 = vld [vmem:[%s5 + $0x98] sm:$0xff]
    %v337 = vld [vmem:[%s5 + $0xa0] sm:$0xff]
    %v338 = vld [vmem:[%s5 + $0xa8] sm:$0xff]
    %vm339 = vcmask 392192
    %v341 = vsel %vm339, %v41, 0
    %343 = vmatpush.msra.mxu0 %v332
    %344 = vmatpush.msra.mxu0 %v331
    %345 = vmatpush.msra.mxu0 %v330
    %346 = vmatpush.msra.mxu0 %v329
    %347 = vmatpush.msra.mxu0 %v328
    %348 = vmatpush.msra.mxu0 %v327
    %349 = vmatpush.msra.mxu0 %v326
    %350 = vmatpush.msra.mxu0 %v325
    %351 = vmatpush.msra.mxu0 %v324
    %352 = vmatpush.msra.mxu0 %v323
    %353 = vmatpush.msra.mxu0 %v322
    %354 = vmatpush.msra.mxu0 %v321
    %355 = vmatpush.msra.mxu0 %v320
    %356 = vmatpush.msra.mxu0 %v319
    %357 = vmatpush.msra.mxu0 %v318
    %358 = vmatpush.msra.mxu0 %v317
    %359 = vmatmul.f32.gmra.mxu0 %v40
    %v360 = vpop.f32.mrf.mxu0
    %v361 = vadd.f32 0.0, %v360
    %362 = vdwg.mxu0
    %363 = vmatpush.msra.mxu0 0.0
    %364 = vmatpush.msra.mxu0 0.0
    %365 = vmatpush.msra.mxu0 0.0
    %366 = vmatpush.msra.mxu0 0.0
    %367 = vmatpush.msra.mxu0 0.0
    %368 = vmatpush.msra.mxu0 0.0
    %369 = vmatpush.msra.mxu0 0.0
    %370 = vmatpush.msra.mxu0 0.0
    %371 = vmatpush.msra.mxu0 0.0
    %372 = vmatpush.msra.mxu0 0.0
    %373 = vmatpush.msra.mxu0 %v338
    %374 = vmatpush.msra.mxu0 %v337
    %375 = vmatpush.msra.mxu0 %v336
    %376 = vmatpush.msra.mxu0 %v335
    %377 = vmatpush.msra.mxu0 %v334
    %378 = vmatpush.msra.mxu0 %v333
    %379 = vmatmul.f32.gmra.mxu0 %v341
    %v380 = vpop.f32.mrf.mxu0
    %v381 = vadd.f32 %v361, %v380
    %382 = vdwg.mxu0
    %v383 = vadd.f32 %v315, %v381
    %v384 = vmul.f32 %v32, %v32
    %vm385 = vcmask 242688
    %v386 = vsel %vm385, %v384, 0.0
    %387 = vadd.xlane.f32.xlu0 %v386
    %v388 = vpop.xlane.xlu0 %387
    %v389 = vmul.f32 %v33, %v33
    %v390 = vmul.f32 %v34, %v34
    %v391 = vmul.f32 %v35, %v35
    %v392 = vmul.f32 %v36, %v36
    %v393 = vmul.f32 %v37, %v37
    %v394 = vmul.f32 %v38, %v38
    %v395 = vmul.f32 %v39, %v39
    %v396 = vsel %vm293, %v389, 0.0
    %v397 = vsel %vm293, %v390, 0.0
    %v398 = vadd.f32 %v396, %v397
    %v399 = vsel %vm293, %v391, 0.0
    %v400 = vadd.f32 %v398, %v399
    %v401 = vsel %vm293, %v392, 0.0
    %v402 = vadd.f32 %v400, %v401
    %v403 = vsel %vm293, %v393, 0.0
    %v404 = vadd.f32 %v402, %v403
    %v405 = vsel %vm293, %v394, 0.0
    %v406 = vadd.f32 %v404, %v405
    %vm407 = vcmask 193536
    %v408 = vsel %vm407, %v395, 0.0
    %v409 = vadd.f32 %v406, %v408
    %410 = vadd.xlane.f32.xlu0 %v409
    %v411 = vpop.xlane.xlu0 %410
    %v412 = vadd.f32 %v388, %v411
    %v413 = vmul.f32 %v40, %v40
    %v414 = vmul.f32 %v41, %v41
    %v415 = vsel %vm293, %v413, 0.0
    %vm416 = vcmask 390144
    %v417 = vsel %vm416, %v414, 0.0
    %v418 = vadd.f32 %v415, %v417
    %419 = vadd.xlane.f32.xlu0 %v418
    %v420 = vpop.xlane.xlu0 %419
    %v421 = vadd.f32 %v412, %v420
    %v422 = vld [vmem:[%s6] sm:$0x1]
    %v424 = vperm.slane %v422, 0
    %v426 = vadd.f32 %v421, %v424
    %v427 = vmul.f32 %v383, 2.0
    %v428 = vsub.f32 %v426, %v427
    %v429 = vmax.f32 %v428, 0.0
    %v430 = vrsqrt.pop %v429
    %v431 = vmul.f32 %v430, %v429
    %v432 = vmul.f32 %v431, %v430
    %v433 = vmul.f32 0.5, %v432
    %v434 = vsub.f32 1.5, %v433
    %v435 = vmul.f32 %v430, %v434
    %vm436 = vweird.f32 %v429
    %vm437 = vweird.f32 %v430
    %vm438 = vmor %vm436, %vm437
    %v439 = vsel %vm438, %v430, %v435
    %vm440 = vcmask 62464
    %v441 = vsel %vm440, %v439, inf
    %442 = vmin.xlane.f32.xlu0 %v441
    %v443 = vpop.xlane.xlu0 %442
    %v444 = vsub.f32 %v439, %v443
    %v445 = vsel %vm440, %v444, -inf
    %446 = vmax.xlane.f32.xlu0 %v445
    %v447 = vpop.xlane.xlu0 %446
    %v448 = vrcp.pop %v447
    %v449 = vmul.f32 %v444, %v448
    %450 = vst.msk [vmem:[#allocation2] sm:$0x3f] %vm440, %v449
    %v451 = vld [vmem:[%s7] sm:$0xff]
    %vm452 = vcmask 64512
    %v454 = vsel %vm452, %v449, 0
    %456 = vmatpush.msra.mxu0 0.0
    %457 = vmatpush.msra.mxu0 0.0
    %458 = vmatpush.msra.mxu0 0.0
    %459 = vmatpush.msra.mxu0 0.0
    %460 = vmatpush.msra.mxu0 0.0
    %461 = vmatpush.msra.mxu0 0.0
    %462 = vmatpush.msra.mxu0 0.0
    %463 = vmatpush.msra.mxu0 0.0
    %464 = vmatpush.msra.mxu0 0.0
    %465 = vmatpush.msra.mxu0 0.0
    %466 = vmatpush.msra.mxu0 0.0
    %467 = vmatpush.msra.mxu0 0.0
    %468 = vmatpush.msra.mxu0 0.0
    %469 = vmatpush.msra.mxu0 0.0
    %470 = vmatpush.msra.mxu0 0.0
    %471 = vmatpush.msra.mxu0 %v451
    %472 = vmatmul.f32.gmra.mxu0 %v454
    %v473 = vpop.f32.mrf.mxu0
    %v474 = vadd.f32 0.0, %v473
    %475 = vdwg.mxu0
    %vm476 = vcmask 13312
    %v477 = vsel %vm476, %v474, -inf
    %478 = vmax.xlane.f32.xlu0 %v477
    %v479 = vpop.xlane.xlu0 %478
    %v480 = vsub.f32 %v474, %v479
    %v481 = vmul.f32 %v480, 1.442695
    %v482 = vpow.pop %v481
    %v483 = vsel %vm476, %v482, 0.0
    %484 = vadd.xlane.f32.xlu0 %v483
    %v485 = vpop.xlane.xlu0 %484
    %v486 = vrcp.pop %v485
    %v487 = vmul.f32 %v482, %v486
    %488 = vst.msk [vmem:[%s8] sm:$0x3f] %vm476, %v487
    // Predicated region
    $region34: #{protonet_forward.3} parent=1 // pred_check
      _
    $region35: #{protonet_forward.3} parent=1 // pred_check_branch
      %490 = sbr.rel (0) target = $region37
    $region36: #{protonet_forward.3} parent=1 // pred_region
      _
    $region37: #{protonet_forward.3} parent=1 // pred_fallthru
      _
    // Predicated region
    $region38: #{protonet_forward.3} parent=1 // pred_check
      _
    $region39: #{protonet_forward.3} parent=1 // pred_check_branch
      %492 = sbr.rel (0) target = $region41
    $region40: #{protonet_forward.3} parent=1 // pred_region
      %494 = vsyncadd [#allocation3], 0
      %s496 = sshll.u32 [#allocation2], 4
      %s497 = int_to_ptr.vmem [resolvable:$true] %s496
      %s498 = sshll.u32 %s9, 4
      %s499 = int_to_ptr.hbm [resolvable:$true] %s498
      %501 = dma.vmem_to_hbm [thread:$0]  %s497, 128, %s499, [#allocation3]
    $region41: #{protonet_forward.3} parent=1 // pred_fallthru
      _
    // Predicated region
    $region42: #{protonet_forward.3} parent=1 // pred_check
      _
    $region43: #{protonet_forward.3} parent=1 // pred_check_branch
      %503 = sbr.rel (0) target = $region45
    $region44: #{protonet_forward.3} parent=1 // pred_region
      _
    $region45: #{protonet_forward.3} parent=1 // pred_fallthru
      _
    // Predicated region
    $region46: #{protonet_forward.3} parent=1 // pred_check
      _
    $region47: #{protonet_forward.3} parent=1 // pred_check_branch
      %505 = sbr.rel (0) target = $region49
    $region48: #{protonet_forward.3} parent=1 // pred_region
      %507 = dma.done [#allocation3], 128
    $region49: #{protonet_forward.3} parent=1 // pred_fallthru
      _
    %508 = vsyncpa [#allocation3], 1

</llo_original>
